<compile_context>
chip_gen: v5e
topology: v5e:2x2
jax: 0.10.0
libtpu: 0.0.40
codegen_flags: <defaults>
</compile_context>

<pallas_src>
import functools

import jax
import jax.numpy as jnp
from jax import lax
from jax.experimental import pallas as pl
from jax.experimental.pallas import tpu as pltpu


# ----------------------------- GEMM (+bias) kernel ---------------------------

def _linear_kernel(x_ref, w_ref, b_ref, o_ref, acc_ref):
    """One (tm, tn) output tile; K reduced over the last grid axis."""
    k = pl.program_id(2)

    @pl.when(k == 0)
    def _init():
        acc_ref[...] = jnp.zeros_like(acc_ref)

    acc_ref[...] += jnp.dot(x_ref[...], w_ref[...],
                            preferred_element_type=jnp.float32)

    @pl.when(k == pl.num_programs(2) - 1)
    def _finalize():
        o_ref[...] = (acc_ref[...] + b_ref[...]).astype(o_ref.dtype)


def pallas_linear(x, w, b, *, out_dtype=jnp.bfloat16,
                  tile_m=256, tile_n=256, tile_k=512):
    """y = x @ w + b. bf16 MXU operands, f32 accumulation, fused bias.

    N that is not a multiple of 128 is zero-padded (weights/bias only) so the
    kernel's output stores are lane-dense unmasked vst; the padding is sliced
    off after the call.
    """
    if x.dtype != jnp.bfloat16:
        x = x.astype(jnp.bfloat16)
    if w.dtype != jnp.bfloat16:
        w = w.astype(jnp.bfloat16)
    M, K = x.shape
    K2, N = w.shape
    assert K == K2 and b.shape == (N,)

    n_pad = (-N) % 128
    if n_pad:
        w = jnp.pad(w, ((0, 0), (0, n_pad)))
        b = jnp.pad(b, (0, n_pad))
    Np = N + n_pad

    # Full-dim blocks when a dim is small: avoids ragged / wasted MXU work on
    # M (e.g. M=B*L=130) and always satisfies the (8,128) block rule, since a
    # block equal to the full array dim is legal.
    tm = tile_m if M >= 2 * tile_m else M
    tn = tile_n if Np % tile_n == 0 else Np
    tk = tile_k if K % tile_k == 0 else K     # K blocks must cover K exactly

    grid = (pl.cdiv(M, tm), Np // tn, K // tk)

    out = pl.pallas_call(
        _linear_kernel,
        out_shape=jax.ShapeDtypeStruct((M, Np), out_dtype),
        grid=grid,
        in_specs=[
            pl.BlockSpec((tm, tk), lambda i, j, kk: (i, kk)),
            pl.BlockSpec((tk, tn), lambda i, j, kk: (kk, j)),
            pl.BlockSpec((1, tn), lambda i, j, kk: (0, j)),
        ],
        out_specs=pl.BlockSpec((tm, tn), lambda i, j, kk: (i, j)),
        scratch_shapes=[pltpu.VMEM((tm, tn), jnp.float32)],
        compiler_params=pltpu.CompilerParams(
            dimension_semantics=("parallel", "parallel", "arbitrary")),
        # Note: set vmem_limit_bytes explicitly here if tiles are ever scaled
        # up for real CLIP dims (v7x scoped default is 32 MiB of 64 MiB).
    )(x, w, b.astype(jnp.float32).reshape(1, Np))

    return out[:, :N] if n_pad else out


# ----------------------------- attention-pool kernel -------------------------

def _attnpool_kernel(q_ref, kv_ref, o_ref, *, num_heads):
    """Single-query (mean token) MHA for a block of batch elements.

    q_ref:  (bb, 1, C)   bf16, already scaled by head_dim**-0.5 (folded in q_w)
    kv_ref: (bb, L, 2C)  bf16, K in lanes [:C], V in lanes [C:]
    o_ref:  (bb, 1, C)   bf16
    """
    bb = q_ref.shape[0]
    C = q_ref.shape[-1]
    hd = C // num_heads

    for b in range(bb):                       # static unroll over batched rows
        qb = q_ref[b]                         # (1, C)
        kvb = kv_ref[b]                       # (L, 2C)
        for h in range(num_heads):            # static unroll over heads
            lo = h * hd
            qh = qb[:, lo:lo + hd]            # (1, hd)
            kh = kvb[:, lo:lo + hd]           # (L, hd)
            vh = kvb[:, C + lo:C + lo + hd]   # (L, hd)

            # Scores on the MXU: q . k^T via dot_general (no explicit k.T).
            s = lax.dot_general(qh, kh, (((1,), (1,)), ((), ())),
                                preferred_element_type=jnp.float32)   # (1, L)
            s = s - jnp.max(s, axis=-1, keepdims=True)
            p = jnp.exp(s)
            p = p * pl.reciprocal(jnp.sum(p, axis=-1, keepdims=True),
                                  approx=True)

            # Weighted sum on the MXU.
            oh = jnp.dot(p.astype(kvb.dtype), vh,
                         preferred_element_type=jnp.float32)          # (1, hd)

            # Direct slice store (no concatenate of per-head results).
            o_ref[b, :, pl.ds(lo, hd)] = oh.astype(o_ref.dtype)


def pallas_attention_pool(q, kv, *, num_heads):
    """q: (B, 1, C) pre-scaled mean-token query; kv: (B, L, 2C).  -> (B, 1, C)."""
    B, _, C = q.shape
    L = kv.shape[1]

    # >=2 grid steps on the "parallel" axis (both v7x TensorCores get work),
    # with B//2 batch elements per step to amortize per-step overhead.
    bb = B // 2 if (B % 2 == 0 and B >= 2) else 1
    grid = (B // bb,)

    return pl.pallas_call(
        functools.partial(_attnpool_kernel, num_heads=num_heads),
        out_shape=jax.ShapeDtypeStruct((B, 1, C), jnp.bfloat16),
        grid=grid,
        in_specs=[
            pl.BlockSpec((bb, 1, C), lambda i: (i, 0, 0)),
            pl.BlockSpec((bb, L, 2 * C), lambda i: (i, 0, 0)),
        ],
        out_specs=pl.BlockSpec((bb, 1, C), lambda i: (i, 0, 0)),
        compiler_params=pltpu.CompilerParams(dimension_semantics=("parallel",)),
    )(q, kv)


# ----------------------------- forward pass -----------------------------------

def attention_pool2d_forward(x, params, *, num_heads):
    """Matches AttentionPool2d.forward (returns the pooled mean-query token)."""
    B, C, H, W = x.shape
    HW = H * W
    hd = C // num_heads
    scale = hd ** -0.5
    L = HW + 1

    # TODO(synk): token prep (flatten + mean-token concat + positional add) is
    # tiny plain-JAX layout glue; it is emitted directly in bf16 so the GEMMs
    # read bf16 activations with no separate cast round trip.
    x_t = x.astype(jnp.float32).reshape(B, C, HW).transpose(0, 2, 1)   # (B,HW,C)
    tokens = jnp.concatenate([jnp.mean(x_t, axis=1, keepdims=True), x_t], axis=1)
    tokens = (tokens + params["pos_emb"][None, :, :]).astype(jnp.bfloat16)

    # Softmax scale folded into the q projection (weight-sized op); K|V fused
    # along N so a single GEMM produces both with a 2*C-wide lane-dense output.
    q_w = (params["q_w"] * scale).astype(jnp.bfloat16)
    q_b = params["q_b"] * scale
    kv_w = jnp.concatenate([params["k_w"], params["v_w"]],
                           axis=1).astype(jnp.bfloat16)
    kv_b = jnp.concatenate([params["k_b"], params["v_b"]])
    c_w = params["c_w"].astype(jnp.bfloat16)

    # Only row 0 (the mean token) of the MHA output is returned -> project the
    # query for B rows only; K/V for all B*L tokens in one fused GEMM.
    q = pallas_linear(tokens[:, 0, :], q_w, q_b).reshape(B, 1, C)       # bf16
    kv = pallas_linear(tokens.reshape(B * L, C), kv_w, kv_b)            # (B*L,2C)
    kv = kv.reshape(B, L, 2 * C)

    o = pallas_attention_pool(q, kv, num_heads=num_heads)               # (B,1,C)
    return pallas_linear(o.reshape(B, C), c_w, params["c_b"],
                         out_dtype=jnp.float32)


# ----------------------------- pure-JAX reference (full MHA, row 0) -----------

def reference_forward(x, params, *, num_heads):
    B, C, H, W = x.shape
    HW = H * W
    hd = C // num_heads
    x_t = x.reshape(B, C, HW).transpose(2, 0, 1)                       # (HW,B,C)
    x_t = jnp.concatenate([x_t.mean(axis=0, keepdims=True), x_t], axis=0)
    x_t = x_t + params["pos_emb"][:, None, :]
    L = HW + 1
    q = x_t @ params["q_w"] + params["q_b"]
    k = x_t @ params["k_w"] + params["k_b"]
    v = x_t @ params["v_w"] + params["v_b"]
    qh = q.reshape(L, B, num_heads, hd)
    kh = k.reshape(L, B, num_heads, hd)
    vh = v.reshape(L, B, num_heads, hd)
    s = jnp.einsum("qbhd,kbhd->bhqk", qh * hd ** -0.5, kh)
    p = jax.nn.softmax(s, axis=-1)
    o = jnp.einsum("bhqk,kbhd->qbhd", p, vh).reshape(L, B, C)
    out = o @ params["c_w"] + params["c_b"]
    return out[0]


# ----------------------------- deterministic params ---------------------------

def make_params(key, spacial_dim, embed_dim, output_dim):
    L = spacial_dim * spacial_dim + 1
    ks = jax.random.split(key, 9)
    lin = 1.0 / (embed_dim ** 0.5)

    def nrm(k, shape):
        return jax.random.normal(k, shape, jnp.float32) * lin

    return {
        "pos_emb": nrm(ks[0], (L, embed_dim)),
        "q_w": nrm(ks[1], (embed_dim, embed_dim)), "q_b": nrm(ks[2], (embed_dim,)),
        "k_w": nrm(ks[3], (embed_dim, embed_dim)), "k_b": nrm(ks[4], (embed_dim,)),
        "v_w": nrm(ks[5], (embed_dim, embed_dim)), "v_b": nrm(ks[6], (embed_dim,)),
        "c_w": nrm(ks[7], (embed_dim, output_dim)), "c_b": nrm(ks[8], (output_dim,)),
    }


# ----------------------------- main -------------------------------------------

if __name__ == "__main__":
    batch, embed_dim, num_heads, spacial_dim, output_dim = 2, 64, 4, 8, 32

    key = jax.random.PRNGKey(0)
    k_par, k_x = jax.random.split(key)
    params = make_params(k_par, spacial_dim, embed_dim, output_dim)
    x = jax.random.normal(k_x, (batch, embed_dim, spacial_dim, spacial_dim),
                          jnp.float32)

    fwd = jax.jit(functools.partial(attention_pool2d_forward, num_heads=num_heads))
    out = jax.block_until_ready(fwd(x, params))
    assert out.shape == (batch, output_dim), out.shape

    ref = reference_forward(x, params, num_heads=num_heads)
    assert jnp.allclose(out, ref, atol=1e-1, rtol=1e-1), (
        "max abs err:", float(jnp.max(jnp.abs(out - ref))))

    print("KERNEL_OK")
</pallas_src>

<mosaic_0001>
module attributes {stable_mosaic.version = 11 : i64} {
  func.func @_linear_kernel(%arg0: i32, %arg1: i32, %arg2: i32, %arg3: memref<130x64xbf16, #tpu.memory_space<vmem>>, %arg4: memref<64x128xbf16, #tpu.memory_space<vmem>>, %arg5: memref<1x128xf32, #tpu.memory_space<vmem>>, %arg6: memref<130x128xbf16, #tpu.memory_space<vmem>>, %arg7: memref<130x128xf32, #tpu.memory_space<vmem>>) attributes {dimension_semantics = [#tpu.dimension_semantics<parallel>, #tpu.dimension_semantics<parallel>, #tpu.dimension_semantics<arbitrary>], iteration_bounds = array<i64: 1, 1, 1>, scalar_prefetch = 0 : i64, scratch_operands = 1 : i64, tpu.core_type = #tpu.core_type<tc>, window_params = [{transform_indices = @transform_0, window_bounds = array<i64: 130, 64>}, {transform_indices = @transform_1, window_bounds = array<i64: 64, 128>}, {transform_indices = @transform_2, window_bounds = array<i64: 1, 128>}, {transform_indices = @transform_3, window_bounds = array<i64: 130, 128>}]} {
    %c0_i32 = arith.constant 0 : i32
    %0 = arith.cmpi eq, %arg2, %c0_i32 : i32
    %1 = arith.extui %0 : i1 to i32
    %c0_i32_0 = arith.constant 0 : i32
    %2 = arith.cmpi ne, %1, %c0_i32_0 : i32
    scf.if %2 {
      %cst_10 = arith.constant 0.000000e+00 : f32
      %12 = vector.broadcast %cst_10 : f32 to vector<130x128xf32>
      %c0_11 = arith.constant 0 : index
      %c0_12 = arith.constant 0 : index
      %13 = vector.load %arg7[%c0_11, %c0_12] : memref<130x128xf32, #tpu.memory_space<vmem>>, vector<130x128xf32>
      tpu.vector_store %arg7[%c0_11, %c0_12], %12 {strides = array<i32>} : memref<130x128xf32, #tpu.memory_space<vmem>>, vector<130x128xf32>,
    } else {
    }
    %c0 = arith.constant 0 : index
    %c0_1 = arith.constant 0 : index
    %3 = vector.load %arg7[%c0, %c0_1] : memref<130x128xf32, #tpu.memory_space<vmem>>, vector<130x128xf32>
    %c0_2 = arith.constant 0 : index
    %c0_3 = arith.constant 0 : index
    %4 = vector.load %arg3[%c0_2, %c0_3] : memref<130x64xbf16, #tpu.memory_space<vmem>>, vector<130x64xbf16>
    %c0_4 = arith.constant 0 : index
    %c0_5 = arith.constant 0 : index
    %5 = vector.load %arg4[%c0_4, %c0_5] : memref<64x128xbf16, #tpu.memory_space<vmem>>, vector<64x128xbf16>
    %cst = arith.constant dense<0.000000e+00> : vector<130x128xf32>
    %6 = tpu.matmul %4, %5, %cst {dimension_numbers = #tpu.dot_dimension_numbers<[1], [0], [0], [1], [0, 0, 1, 1], [], []>} : vector<130x64xbf16>, vector<64x128xbf16>, vector<130x128xf32> -> vector<130x128xf32>
    %7 = arith.addf %3, %6 : vector<130x128xf32>
    %c0_6 = arith.constant 0 : index
    %c0_7 = arith.constant 0 : index
    %8 = vector.load %arg7[%c0_6, %c0_7] : memref<130x128xf32, #tpu.memory_space<vmem>>, vector<130x128xf32>
    tpu.vector_store %arg7[%c0_6, %c0_7], %7 {strides = array<i32>} : memref<130x128xf32, #tpu.memory_space<vmem>>, vector<130x128xf32>,
    %c0_i32_8 = arith.constant 0 : i32
    %9 = arith.cmpi eq, %arg2, %c0_i32_8 : i32
    %10 = arith.extui %9 : i1 to i32
    %c0_i32_9 = arith.constant 0 : i32
    %11 = arith.cmpi ne, %10, %c0_i32_9 : i32
    scf.if %11 {
      %c0_10 = arith.constant 0 : index
      %c0_11 = arith.constant 0 : index
      %12 = vector.load %arg7[%c0_10, %c0_11] : memref<130x128xf32, #tpu.memory_space<vmem>>, vector<130x128xf32>
      %c0_12 = arith.constant 0 : index
      %c0_13 = arith.constant 0 : index
      %13 = vector.load %arg5[%c0_12, %c0_13] : memref<1x128xf32, #tpu.memory_space<vmem>>, vector<1x128xf32>
      %14 = vector.broadcast %13 : vector<1x128xf32> to vector<130x128xf32>
      %15 = arith.addf %12, %14 : vector<130x128xf32>
      %16 = arith.truncf %15 : vector<130x128xf32> to vector<130x128xbf16>
      %c0_14 = arith.constant 0 : index
      %c0_15 = arith.constant 0 : index
      %17 = vector.load %arg6[%c0_14, %c0_15] : memref<130x128xbf16, #tpu.memory_space<vmem>>, vector<130x128xbf16>
      tpu.vector_store %arg6[%c0_14, %c0_15], %16 {strides = array<i32>} : memref<130x128xbf16, #tpu.memory_space<vmem>>, vector<130x128xbf16>,
    } else {
    }
    return
  }
  func.func @transform_0(%arg0: i32, %arg1: i32, %arg2: i32) -> (i32, i32) {
    %c0_i32 = arith.constant 0 : i32
    return %arg0, %arg2 : i32, i32
  }
  func.func @transform_1(%arg0: i32, %arg1: i32, %arg2: i32) -> (i32, i32) {
    %c0_i32 = arith.constant 0 : i32
    return %arg2, %arg1 : i32, i32
  }
  func.func @transform_2(%arg0: i32, %arg1: i32, %arg2: i32) -> (i32, i32) {
    %c0_i32 = arith.constant 0 : i32
    %c0_i32_0 = arith.constant 0 : i32
    return %c0_i32, %arg1 : i32, i32
  }
  func.func @transform_3(%arg0: i32, %arg1: i32, %arg2: i32) -> (i32, i32) {
    %c0_i32 = arith.constant 0 : i32
    return %arg0, %arg1 : i32, i32
  }
}

module attributes {stable_mosaic.version = 11 : i64} {
  func.func @_linear_kernel(%arg0: i32, %arg1: i32, %arg2: i32, %arg3: memref<2x64xbf16, #tpu.memory_space<vmem>>, %arg4: memref<64x128xbf16, #tpu.memory_space<vmem>>, %arg5: memref<1x128xf32, #tpu.memory_space<vmem>>, %arg6: memref<2x128xbf16, #tpu.memory_space<vmem>>, %arg7: memref<2x128xf32, #tpu.memory_space<vmem>>) attributes {dimension_semantics = [#tpu.dimension_semantics<parallel>, #tpu.dimension_semantics<parallel>, #tpu.dimension_semantics<arbitrary>], iteration_bounds = array<i64: 1, 1, 1>, scalar_prefetch = 0 : i64, scratch_operands = 1 : i64, tpu.core_type = #tpu.core_type<tc>, window_params = [{transform_indices = @transform_0, window_bounds = array<i64: 2, 64>}, {transform_indices = @transform_1, window_bounds = array<i64: 64, 128>}, {transform_indices = @transform_2, window_bounds = array<i64: 1, 128>}, {transform_indices = @transform_3, window_bounds = array<i64: 2, 128>}]} {
    %c0_i32 = arith.constant 0 : i32
    %0 = arith.cmpi eq, %arg2, %c0_i32 : i32
    %1 = arith.extui %0 : i1 to i32
    %c0_i32_0 = arith.constant 0 : i32
    %2 = arith.cmpi ne, %1, %c0_i32_0 : i32
    scf.if %2 {
      %cst_10 = arith.constant 0.000000e+00 : f32
      %12 = vector.broadcast %cst_10 : f32 to vector<2x128xf32>
      %c0_11 = arith.constant 0 : index
      %c0_12 = arith.constant 0 : index
      %13 = vector.load %arg7[%c0_11, %c0_12] : memref<2x128xf32, #tpu.memory_space<vmem>>, vector<2x128xf32>
      tpu.vector_store %arg7[%c0_11, %c0_12], %12 {strides = array<i32>} : memref<2x128xf32, #tpu.memory_space<vmem>>, vector<2x128xf32>,
    } else {
    }
    %c0 = arith.constant 0 : index
    %c0_1 = arith.constant 0 : index
    %3 = vector.load %arg7[%c0, %c0_1] : memref<2x128xf32, #tpu.memory_space<vmem>>, vector<2x128xf32>
    %c0_2 = arith.constant 0 : index
    %c0_3 = arith.constant 0 : index
    %4 = vector.load %arg3[%c0_2, %c0_3] : memref<2x64xbf16, #tpu.memory_space<vmem>>, vector<2x64xbf16>
    %c0_4 = arith.constant 0 : index
    %c0_5 = arith.constant 0 : index
    %5 = vector.load %arg4[%c0_4, %c0_5] : memref<64x128xbf16, #tpu.memory_space<vmem>>, vector<64x128xbf16>
    %cst = arith.constant dense<0.000000e+00> : vector<2x128xf32>
    %6 = tpu.matmul %4, %5, %cst {dimension_numbers = #tpu.dot_dimension_numbers<[1], [0], [0], [1], [0, 0, 1, 1], [], []>} : vector<2x64xbf16>, vector<64x128xbf16>, vector<2x128xf32> -> vector<2x128xf32>
    %7 = arith.addf %3, %6 : vector<2x128xf32>
    %c0_6 = arith.constant 0 : index
    %c0_7 = arith.constant 0 : index
    %8 = vector.load %arg7[%c0_6, %c0_7] : memref<2x128xf32, #tpu.memory_space<vmem>>, vector<2x128xf32>
    tpu.vector_store %arg7[%c0_6, %c0_7], %7 {strides = array<i32>} : memref<2x128xf32, #tpu.memory_space<vmem>>, vector<2x128xf32>,
    %c0_i32_8 = arith.constant 0 : i32
    %9 = arith.cmpi eq, %arg2, %c0_i32_8 : i32
    %10 = arith.extui %9 : i1 to i32
    %c0_i32_9 = arith.constant 0 : i32
    %11 = arith.cmpi ne, %10, %c0_i32_9 : i32
    scf.if %11 {
      %c0_10 = arith.constant 0 : index
      %c0_11 = arith.constant 0 : index
      %12 = vector.load %arg7[%c0_10, %c0_11] : memref<2x128xf32, #tpu.memory_space<vmem>>, vector<2x128xf32>
      %c0_12 = arith.constant 0 : index
      %c0_13 = arith.constant 0 : index
      %13 = vector.load %arg5[%c0_12, %c0_13] : memref<1x128xf32, #tpu.memory_space<vmem>>, vector<1x128xf32>
      %14 = vector.broadcast %13 : vector<1x128xf32> to vector<2x128xf32>
      %15 = arith.addf %12, %14 : vector<2x128xf32>
      %16 = arith.truncf %15 : vector<2x128xf32> to vector<2x128xbf16>
      %c0_14 = arith.constant 0 : index
      %c0_15 = arith.constant 0 : index
      %17 = vector.load %arg6[%c0_14, %c0_15] : memref<2x128xbf16, #tpu.memory_space<vmem>>, vector<2x128xbf16>
      tpu.vector_store %arg6[%c0_14, %c0_15], %16 {strides = array<i32>} : memref<2x128xbf16, #tpu.memory_space<vmem>>, vector<2x128xbf16>,
    } else {
    }
    return
  }
  func.func @transform_0(%arg0: i32, %arg1: i32, %arg2: i32) -> (i32, i32) {
    %c0_i32 = arith.constant 0 : i32
    return %arg0, %arg2 : i32, i32
  }
  func.func @transform_1(%arg0: i32, %arg1: i32, %arg2: i32) -> (i32, i32) {
    %c0_i32 = arith.constant 0 : i32
    return %arg2, %arg1 : i32, i32
  }
  func.func @transform_2(%arg0: i32, %arg1: i32, %arg2: i32) -> (i32, i32) {
    %c0_i32 = arith.constant 0 : i32
    %c0_i32_0 = arith.constant 0 : i32
    return %c0_i32, %arg1 : i32, i32
  }
  func.func @transform_3(%arg0: i32, %arg1: i32, %arg2: i32) -> (i32, i32) {
    %c0_i32 = arith.constant 0 : i32
    return %arg0, %arg1 : i32, i32
  }
}

module attributes {stable_mosaic.version = 11 : i64} {
  func.func @_attnpool_kernel(%arg0: i32, %arg1: memref<1x1x64xbf16, #tpu.memory_space<vmem>>, %arg2: memref<1x65x128xbf16, #tpu.memory_space<vmem>>, %arg3: memref<1x1x64xbf16, #tpu.memory_space<vmem>>) attributes {dimension_semantics = [#tpu.dimension_semantics<parallel>], iteration_bounds = array<i64: 2>, scalar_prefetch = 0 : i64, scratch_operands = 0 : i64, tpu.core_type = #tpu.core_type<tc>, window_params = [{transform_indices = @transform_0, window_bounds = array<i64: 1, 1, 64>}, {transform_indices = @transform_1, window_bounds = array<i64: 1, 65, 128>}, {transform_indices = @transform_2, window_bounds = array<i64: 1, 1, 64>}]} {
    %c0 = arith.constant 0 : index
    %c0_0 = arith.constant 0 : index
    %c0_1 = arith.constant 0 : index
    %0 = vector.load %arg1[%c0, %c0_0, %c0_1] : memref<1x1x64xbf16, #tpu.memory_space<vmem>>, vector<1x1x64xbf16>
    %1 = vector.shape_cast %0 : vector<1x1x64xbf16> to vector<1x64xbf16>
    %c0_2 = arith.constant 0 : index
    %c0_3 = arith.constant 0 : index
    %c0_4 = arith.constant 0 : index
    %2 = vector.load %arg2[%c0_2, %c0_3, %c0_4] : memref<1x65x128xbf16, #tpu.memory_space<vmem>>, vector<1x65x128xbf16>
    %3 = vector.shape_cast %2 : vector<1x65x128xbf16> to vector<65x128xbf16>
    %4 = vector.extract_strided_slice %1 {offsets = [0, 0], sizes = [1, 16], strides = [1, 1]} : vector<1x64xbf16> to vector<1x16xbf16>
    %5 = vector.extract_strided_slice %3 {offsets = [0, 0], sizes = [65, 16], strides = [1, 1]} : vector<65x128xbf16> to vector<65x16xbf16>
    %6 = vector.extract_strided_slice %3 {offsets = [0, 64], sizes = [65, 16], strides = [1, 1]} : vector<65x128xbf16> to vector<65x16xbf16>
    %cst = arith.constant dense<0.000000e+00> : vector<1x65xf32>
    %7 = tpu.matmul %4, %5, %cst {dimension_numbers = #tpu.dot_dimension_numbers<[1], [1], [0], [0], [0, 0, 1, 0], [], []>} : vector<1x16xbf16>, vector<65x16xbf16>, vector<1x65xf32> -> vector<1x65xf32>
    %cst_5 = arith.constant dense<0xFF800000> : vector<1xf32>
    %8 = vector.multi_reduction <maximumf>, %7, %cst_5 [1] : vector<1x65xf32> to vector<1xf32>
    %9 = vector.shape_cast %8 : vector<1xf32> to vector<1x1xf32>
    %10 = vector.broadcast %9 : vector<1x1xf32> to vector<1x65xf32>
    %11 = arith.subf %7, %10 : vector<1x65xf32>
    %12 = math.exp %11 : vector<1x65xf32>
    %cst_6 = arith.constant dense<0.000000e+00> : vector<1xf32>
    %13 = vector.multi_reduction <add>, %12, %cst_6 [1] : vector<1x65xf32> to vector<1xf32>
    %14 = vector.shape_cast %13 : vector<1xf32> to vector<1x1xf32>
    %15 = tpu.reciprocal %14 {approx = true} : vector<1x1xf32> -> vector<1x1xf32>
    %16 = vector.broadcast %15 : vector<1x1xf32> to vector<1x65xf32>
    %17 = arith.mulf %12, %16 : vector<1x65xf32>
    %18 = arith.truncf %17 : vector<1x65xf32> to vector<1x65xbf16>
    %cst_7 = arith.constant dense<0.000000e+00> : vector<1x16xf32>
    %19 = tpu.matmul %18, %6, %cst_7 {dimension_numbers = #tpu.dot_dimension_numbers<[1], [0], [0], [1], [0, 0, 1, 1], [], []>} : vector<1x65xbf16>, vector<65x16xbf16>, vector<1x16xf32> -> vector<1x16xf32>
    %20 = arith.truncf %19 : vector<1x16xf32> to vector<1x16xbf16>
    %c0_8 = arith.constant 0 : index
    %c0_9 = arith.constant 0 : index
    %c0_10 = arith.constant 0 : index
    %21 = vector.load %arg3[%c0_8, %c0_9, %c0_10] : memref<1x1x64xbf16, #tpu.memory_space<vmem>>, vector<1x1x16xbf16>
    %22 = vector.shape_cast %21 : vector<1x1x16xbf16> to vector<1x16xbf16>
    %23 = vector.shape_cast %20 : vector<1x16xbf16> to vector<1x1x16xbf16>
    tpu.vector_store %arg3[%c0_8, %c0_9, %c0_10], %23 {strides = array<i32>} : memref<1x1x64xbf16, #tpu.memory_space<vmem>>, vector<1x1x16xbf16>,
    %24 = vector.extract_strided_slice %1 {offsets = [0, 16], sizes = [1, 16], strides = [1, 1]} : vector<1x64xbf16> to vector<1x16xbf16>
    %25 = vector.extract_strided_slice %3 {offsets = [0, 16], sizes = [65, 16], strides = [1, 1]} : vector<65x128xbf16> to vector<65x16xbf16>
    %26 = vector.extract_strided_slice %3 {offsets = [0, 80], sizes = [65, 16], strides = [1, 1]} : vector<65x128xbf16> to vector<65x16xbf16>
    %cst_11 = arith.constant dense<0.000000e+00> : vector<1x65xf32>
    %27 = tpu.matmul %24, %25, %cst_11 {dimension_numbers = #tpu.dot_dimension_numbers<[1], [1], [0], [0], [0, 0, 1, 0], [], []>} : vector<1x16xbf16>, vector<65x16xbf16>, vector<1x65xf32> -> vector<1x65xf32>
    %cst_12 = arith.constant dense<0xFF800000> : vector<1xf32>
    %28 = vector.multi_reduction <maximumf>, %27, %cst_12 [1] : vector<1x65xf32> to vector<1xf32>
    %29 = vector.shape_cast %28 : vector<1xf32> to vector<1x1xf32>
    %30 = vector.broadcast %29 : vector<1x1xf32> to vector<1x65xf32>
    %31 = arith.subf %27, %30 : vector<1x65xf32>
    %32 = math.exp %31 : vector<1x65xf32>
    %cst_13 = arith.constant dense<0.000000e+00> : vector<1xf32>
    %33 = vector.multi_reduction <add>, %32, %cst_13 [1] : vector<1x65xf32> to vector<1xf32>
    %34 = vector.shape_cast %33 : vector<1xf32> to vector<1x1xf32>
    %35 = tpu.reciprocal %34 {approx = true} : vector<1x1xf32> -> vector<1x1xf32>
    %36 = vector.broadcast %35 : vector<1x1xf32> to vector<1x65xf32>
    %37 = arith.mulf %32, %36 : vector<1x65xf32>
    %38 = arith.truncf %37 : vector<1x65xf32> to vector<1x65xbf16>
    %cst_14 = arith.constant dense<0.000000e+00> : vector<1x16xf32>
    %39 = tpu.matmul %38, %26, %cst_14 {dimension_numbers = #tpu.dot_dimension_numbers<[1], [0], [0], [1], [0, 0, 1, 1], [], []>} : vector<1x65xbf16>, vector<65x16xbf16>, vector<1x16xf32> -> vector<1x16xf32>
    %40 = arith.truncf %39 : vector<1x16xf32> to vector<1x16xbf16>
    %c0_15 = arith.constant 0 : index
    %c0_16 = arith.constant 0 : index
    %c16 = arith.constant 16 : index
    %41 = vector.load %arg3[%c0_15, %c0_16, %c16] : memref<1x1x64xbf16, #tpu.memory_space<vmem>>, vector<1x1x16xbf16>
    %42 = vector.shape_cast %41 : vector<1x1x16xbf16> to vector<1x16xbf16>
    %43 = vector.shape_cast %40 : vector<1x16xbf16> to vector<1x1x16xbf16>
    tpu.vector_store %arg3[%c0_15, %c0_16, %c16], %43 {strides = array<i32>} : memref<1x1x64xbf16, #tpu.memory_space<vmem>>, vector<1x1x16xbf16>,
    %44 = vector.extract_strided_slice %1 {offsets = [0, 32], sizes = [1, 16], strides = [1, 1]} : vector<1x64xbf16> to vector<1x16xbf16>
    %45 = vector.extract_strided_slice %3 {offsets = [0, 32], sizes = [65, 16], strides = [1, 1]} : vector<65x128xbf16> to vector<65x16xbf16>
    %46 = vector.extract_strided_slice %3 {offsets = [0, 96], sizes = [65, 16], strides = [1, 1]} : vector<65x128xbf16> to vector<65x16xbf16>
    %cst_17 = arith.constant dense<0.000000e+00> : vector<1x65xf32>
    %47 = tpu.matmul %44, %45, %cst_17 {dimension_numbers = #tpu.dot_dimension_numbers<[1], [1], [0], [0], [0, 0, 1, 0], [], []>} : vector<1x16xbf16>, vector<65x16xbf16>, vector<1x65xf32> -> vector<1x65xf32>
    %cst_18 = arith.constant dense<0xFF800000> : vector<1xf32>
    %48 = vector.multi_reduction <maximumf>, %47, %cst_18 [1] : vector<1x65xf32> to vector<1xf32>
    %49 = vector.shape_cast %48 : vector<1xf32> to vector<1x1xf32>
    %50 = vector.broadcast %49 : vector<1x1xf32> to vector<1x65xf32>
    %51 = arith.subf %47, %50 : vector<1x65xf32>
    %52 = math.exp %51 : vector<1x65xf32>
    %cst_19 = arith.constant dense<0.000000e+00> : vector<1xf32>
    %53 = vector.multi_reduction <add>, %52, %cst_19 [1] : vector<1x65xf32> to vector<1xf32>
    %54 = vector.shape_cast %53 : vector<1xf32> to vector<1x1xf32>
    %55 = tpu.reciprocal %54 {approx = true} : vector<1x1xf32> -> vector<1x1xf32>
    %56 = vector.broadcast %55 : vector<1x1xf32> to vector<1x65xf32>
    %57 = arith.mulf %52, %56 : vector<1x65xf32>
    %58 = arith.truncf %57 : vector<1x65xf32> to vector<1x65xbf16>
    %cst_20 = arith.constant dense<0.000000e+00> : vector<1x16xf32>
    %59 = tpu.matmul %58, %46, %cst_20 {dimension_numbers = #tpu.dot_dimension_numbers<[1], [0], [0], [1], [0, 0, 1, 1], [], []>} : vector<1x65xbf16>, vector<65x16xbf16>, vector<1x16xf32> -> vector<1x16xf32>
    %60 = arith.truncf %59 : vector<1x16xf32> to vector<1x16xbf16>
    %c0_21 = arith.constant 0 : index
    %c0_22 = arith.constant 0 : index
    %c32 = arith.constant 32 : index
    %61 = vector.load %arg3[%c0_21, %c0_22, %c32] : memref<1x1x64xbf16, #tpu.memory_space<vmem>>, vector<1x1x16xbf16>
    %62 = vector.shape_cast %61 : vector<1x1x16xbf16> to vector<1x16xbf16>
    %63 = vector.shape_cast %60 : vector<1x16xbf16> to vector<1x1x16xbf16>
    tpu.vector_store %arg3[%c0_21, %c0_22, %c32], %63 {strides = array<i32>} : memref<1x1x64xbf16, #tpu.memory_space<vmem>>, vector<1x1x16xbf16>,
    %64 = vector.extract_strided_slice %1 {offsets = [0, 48], sizes = [1, 16], strides = [1, 1]} : vector<1x64xbf16> to vector<1x16xbf16>
    %65 = vector.extract_strided_slice %3 {offsets = [0, 48], sizes = [65, 16], strides = [1, 1]} : vector<65x128xbf16> to vector<65x16xbf16>
    %66 = vector.extract_strided_slice %3 {offsets = [0, 112], sizes = [65, 16], strides = [1, 1]} : vector<65x128xbf16> to vector<65x16xbf16>
    %cst_23 = arith.constant dense<0.000000e+00> : vector<1x65xf32>
    %67 = tpu.matmul %64, %65, %cst_23 {dimension_numbers = #tpu.dot_dimension_numbers<[1], [1], [0], [0], [0, 0, 1, 0], [], []>} : vector<1x16xbf16>, vector<65x16xbf16>, vector<1x65xf32> -> vector<1x65xf32>
    %cst_24 = arith.constant dense<0xFF800000> : vector<1xf32>
    %68 = vector.multi_reduction <maximumf>, %67, %cst_24 [1] : vector<1x65xf32> to vector<1xf32>
    %69 = vector.shape_cast %68 : vector<1xf32> to vector<1x1xf32>
    %70 = vector.broadcast %69 : vector<1x1xf32> to vector<1x65xf32>
    %71 = arith.subf %67, %70 : vector<1x65xf32>
    %72 = math.exp %71 : vector<1x65xf32>
    %cst_25 = arith.constant dense<0.000000e+00> : vector<1xf32>
    %73 = vector.multi_reduction <add>, %72, %cst_25 [1] : vector<1x65xf32> to vector<1xf32>
    %74 = vector.shape_cast %73 : vector<1xf32> to vector<1x1xf32>
    %75 = tpu.reciprocal %74 {approx = true} : vector<1x1xf32> -> vector<1x1xf32>
    %76 = vector.broadcast %75 : vector<1x1xf32> to vector<1x65xf32>
    %77 = arith.mulf %72, %76 : vector<1x65xf32>
    %78 = arith.truncf %77 : vector<1x65xf32> to vector<1x65xbf16>
    %cst_26 = arith.constant dense<0.000000e+00> : vector<1x16xf32>
    %79 = tpu.matmul %78, %66, %cst_26 {dimension_numbers = #tpu.dot_dimension_numbers<[1], [0], [0], [1], [0, 0, 1, 1], [], []>} : vector<1x65xbf16>, vector<65x16xbf16>, vector<1x16xf32> -> vector<1x16xf32>
    %80 = arith.truncf %79 : vector<1x16xf32> to vector<1x16xbf16>
    %c0_27 = arith.constant 0 : index
    %c0_28 = arith.constant 0 : index
    %c48 = arith.constant 48 : index
    %81 = vector.load %arg3[%c0_27, %c0_28, %c48] : memref<1x1x64xbf16, #tpu.memory_space<vmem>>, vector<1x1x16xbf16>
    %82 = vector.shape_cast %81 : vector<1x1x16xbf16> to vector<1x16xbf16>
    %83 = vector.shape_cast %80 : vector<1x16xbf16> to vector<1x1x16xbf16>
    tpu.vector_store %arg3[%c0_27, %c0_28, %c48], %83 {strides = array<i32>} : memref<1x1x64xbf16, #tpu.memory_space<vmem>>, vector<1x1x16xbf16>,
    return
  }
  func.func @transform_0(%arg0: i32) -> (i32, i32, i32) {
    %c0_i32 = arith.constant 0 : i32
    %c0_i32_0 = arith.constant 0 : i32
    %c0_i32_1 = arith.constant 0 : i32
    return %arg0, %c0_i32, %c0_i32_0 : i32, i32, i32
  }
  func.func @transform_1(%arg0: i32) -> (i32, i32, i32) {
    %c0_i32 = arith.constant 0 : i32
    %c0_i32_0 = arith.constant 0 : i32
    %c0_i32_1 = arith.constant 0 : i32
    return %arg0, %c0_i32, %c0_i32_0 : i32, i32, i32
  }
  func.func @transform_2(%arg0: i32) -> (i32, i32, i32) {
    %c0_i32 = arith.constant 0 : i32
    %c0_i32_0 = arith.constant 0 : i32
    %c0_i32_1 = arith.constant 0 : i32
    return %arg0, %c0_i32, %c0_i32_0 : i32, i32, i32
  }
}

module attributes {stable_mosaic.version = 11 : i64} {
  func.func @_linear_kernel(%arg0: i32, %arg1: i32, %arg2: i32, %arg3: memref<2x64xbf16, #tpu.memory_space<vmem>>, %arg4: memref<64x128xbf16, #tpu.memory_space<vmem>>, %arg5: memref<1x128xf32, #tpu.memory_space<vmem>>, %arg6: memref<2x128xf32, #tpu.memory_space<vmem>>, %arg7: memref<2x128xf32, #tpu.memory_space<vmem>>) attributes {dimension_semantics = [#tpu.dimension_semantics<parallel>, #tpu.dimension_semantics<parallel>, #tpu.dimension_semantics<arbitrary>], iteration_bounds = array<i64: 1, 1, 1>, scalar_prefetch = 0 : i64, scratch_operands = 1 : i64, tpu.core_type = #tpu.core_type<tc>, window_params = [{transform_indices = @transform_0, window_bounds = array<i64: 2, 64>}, {transform_indices = @transform_1, window_bounds = array<i64: 64, 128>}, {transform_indices = @transform_2, window_bounds = array<i64: 1, 128>}, {transform_indices = @transform_3, window_bounds = array<i64: 2, 128>}]} {
    %c0_i32 = arith.constant 0 : i32
    %0 = arith.cmpi eq, %arg2, %c0_i32 : i32
    %1 = arith.extui %0 : i1 to i32
    %c0_i32_0 = arith.constant 0 : i32
    %2 = arith.cmpi ne, %1, %c0_i32_0 : i32
    scf.if %2 {
      %cst_10 = arith.constant 0.000000e+00 : f32
      %12 = vector.broadcast %cst_10 : f32 to vector<2x128xf32>
      %c0_11 = arith.constant 0 : index
      %c0_12 = arith.constant 0 : index
      %13 = vector.load %arg7[%c0_11, %c0_12] : memref<2x128xf32, #tpu.memory_space<vmem>>, vector<2x128xf32>
      tpu.vector_store %arg7[%c0_11, %c0_12], %12 {strides = array<i32>} : memref<2x128xf32, #tpu.memory_space<vmem>>, vector<2x128xf32>,
    } else {
    }
    %c0 = arith.constant 0 : index
    %c0_1 = arith.constant 0 : index
    %3 = vector.load %arg7[%c0, %c0_1] : memref<2x128xf32, #tpu.memory_space<vmem>>, vector<2x128xf32>
    %c0_2 = arith.constant 0 : index
    %c0_3 = arith.constant 0 : index
    %4 = vector.load %arg3[%c0_2, %c0_3] : memref<2x64xbf16, #tpu.memory_space<vmem>>, vector<2x64xbf16>
    %c0_4 = arith.constant 0 : index
    %c0_5 = arith.constant 0 : index
    %5 = vector.load %arg4[%c0_4, %c0_5] : memref<64x128xbf16, #tpu.memory_space<vmem>>, vector<64x128xbf16>
    %cst = arith.constant dense<0.000000e+00> : vector<2x128xf32>
    %6 = tpu.matmul %4, %5, %cst {dimension_numbers = #tpu.dot_dimension_numbers<[1], [0], [0], [1], [0, 0, 1, 1], [], []>} : vector<2x64xbf16>, vector<64x128xbf16>, vector<2x128xf32> -> vector<2x128xf32>
    %7 = arith.addf %3, %6 : vector<2x128xf32>
    %c0_6 = arith.constant 0 : index
    %c0_7 = arith.constant 0 : index
    %8 = vector.load %arg7[%c0_6, %c0_7] : memref<2x128xf32, #tpu.memory_space<vmem>>, vector<2x128xf32>
    tpu.vector_store %arg7[%c0_6, %c0_7], %7 {strides = array<i32>} : memref<2x128xf32, #tpu.memory_space<vmem>>, vector<2x128xf32>,
    %c0_i32_8 = arith.constant 0 : i32
    %9 = arith.cmpi eq, %arg2, %c0_i32_8 : i32
    %10 = arith.extui %9 : i1 to i32
    %c0_i32_9 = arith.constant 0 : i32
    %11 = arith.cmpi ne, %10, %c0_i32_9 : i32
    scf.if %11 {
      %c0_10 = arith.constant 0 : index
      %c0_11 = arith.constant 0 : index
      %12 = vector.load %arg7[%c0_10, %c0_11] : memref<2x128xf32, #tpu.memory_space<vmem>>, vector<2x128xf32>
      %c0_12 = arith.constant 0 : index
      %c0_13 = arith.constant 0 : index
      %13 = vector.load %arg5[%c0_12, %c0_13] : memref<1x128xf32, #tpu.memory_space<vmem>>, vector<1x128xf32>
      %14 = vector.broadcast %13 : vector<1x128xf32> to vector<2x128xf32>
      %15 = arith.addf %12, %14 : vector<2x128xf32>
      %c0_14 = arith.constant 0 : index
      %c0_15 = arith.constant 0 : index
      %16 = vector.load %arg6[%c0_14, %c0_15] : memref<2x128xf32, #tpu.memory_space<vmem>>, vector<2x128xf32>
      tpu.vector_store %arg6[%c0_14, %c0_15], %15 {strides = array<i32>} : memref<2x128xf32, #tpu.memory_space<vmem>>, vector<2x128xf32>,
    } else {
    }
    return
  }
  func.func @transform_0(%arg0: i32, %arg1: i32, %arg2: i32) -> (i32, i32) {
    %c0_i32 = arith.constant 0 : i32
    return %arg0, %arg2 : i32, i32
  }
  func.func @transform_1(%arg0: i32, %arg1: i32, %arg2: i32) -> (i32, i32) {
    %c0_i32 = arith.constant 0 : i32
    return %arg2, %arg1 : i32, i32
  }
  func.func @transform_2(%arg0: i32, %arg1: i32, %arg2: i32) -> (i32, i32) {
    %c0_i32 = arith.constant 0 : i32
    %c0_i32_0 = arith.constant 0 : i32
    return %c0_i32, %arg1 : i32, i32
  }
  func.func @transform_3(%arg0: i32, %arg1: i32, %arg2: i32) -> (i32, i32) {
    %c0_i32 = arith.constant 0 : i32
    return %arg0, %arg1 : i32, i32
  }
}

</mosaic_0001>

<llo_original>
// kernel: attention_pool2d_forward.4
$region0: #{attention_pool2d_forward.4}
  #allocation0 [shape = 'u32[]', space=smem, size = 0x4, offset = 0x4, fixed_abs, tag = 'smem constant byte address 0x4 - core index']
  #allocation1 [shape = 'u32[72,128]{1,0:T(1,128)}', space=vmem, size = 0x9000, scoped, tag = 'internal scratch']
  #allocation2 [shape = 'f32[2,128]{1,0:T(2,128)}', space=vmem, size = 0x400, scoped, tag = 'scratch operand']
  %s0 = inlined_call_operand.vmem [shape: bf16[2,64], index: 0, kind: input, shape index: {}]
  %s1 = inlined_call_operand.vmem [shape: bf16[64,128], index: 1, kind: input, shape index: {}]
  %s2 = inlined_call_operand.vmem [shape: f32[1,128], index: 2, kind: input, shape index: {}]
  %s3 = inlined_call_operand.vmem [shape: bf16[2,128], index: 3, kind: output, shape index: {}]
  %s4 = sld [smem:[#allocation0]]
  $region30: #{attention_pool2d_forward.4} parent=0
    _
  %s6 = ssub.s32 1, %s4
  %s7 = scalar_select 0, %s6, %s4
  // Predicated region
  $region2: #{attention_pool2d_forward.4} parent=0 // pred_check
    _
  $region3: #{attention_pool2d_forward.4} parent=0 // pred_check_branch
    %9 = sbr.rel (0) target = $region5
  $region4: #{attention_pool2d_forward.4} parent=0 // pred_region
    _
  $region5: #{attention_pool2d_forward.4} parent=0 // pred_fallthru
    _
  // Predicated region
  $region6: #{attention_pool2d_forward.4} parent=0 // pred_check
    _
  $region7: #{attention_pool2d_forward.4} parent=0 // pred_check_branch
    %11 = sbr.rel (0) target = $region9
  $region8: #{attention_pool2d_forward.4} parent=0 // pred_region
    _
  $region9: #{attention_pool2d_forward.4} parent=0 // pred_fallthru
    _
  // Predicated region
  $region10: #{attention_pool2d_forward.4} parent=0 // pred_check
    _
  $region11: #{attention_pool2d_forward.4} parent=0 // pred_check_branch
    %13 = sbr.rel (0) target = $region13
  $region12: #{attention_pool2d_forward.4} parent=0 // pred_region
    _
  $region13: #{attention_pool2d_forward.4} parent=0 // pred_fallthru
    _
  %p15 = scmp.eq.s32.totalorder 0, 0
  // Predicated region
  $region14: #{attention_pool2d_forward.4} parent=0 // pred_check
    %p16 = pneg %p15
  $region15: #{attention_pool2d_forward.4} parent=0 // pred_check_branch
    %18 = sbr.rel (%p16) target = $region17
  $region16: #{attention_pool2d_forward.4} parent=0 // pred_region
    %19 = vst [vmem:[#allocation2] sm:$0x3] 0.0
  $region17: #{attention_pool2d_forward.4} parent=0 // pred_fallthru
    _
  %v20 = vld [vmem:[#allocation2] sm:$0x3]
  %v21 = vld [vmem:[%s0] sm:$0x1]
  %v22 = vld [vmem:[%s1] sm:$0xf]
  %v23 = vld [vmem:[%s1 + $0x4] sm:$0xf]
  %v24 = vld [vmem:[%s1 + $0x8] sm:$0xf]
  %v25 = vld [vmem:[%s1 + $0xc] sm:$0xf]
  %v26 = vld [vmem:[%s1 + $0x10] sm:$0xf]
  %v27 = vld [vmem:[%s1 + $0x14] sm:$0xf]
  %v28 = vld [vmem:[%s1 + $0x18] sm:$0xf]
  %v29 = vld [vmem:[%s1 + $0x1c] sm:$0xf]
  %v38 = vunpack.c.l.b16 %v22
  %v39 = vunpack.c.l.b16 %v23
  %v40 = vunpack.c.l.b16 %v24
  %v41 = vunpack.c.l.b16 %v25
  %v42 = vunpack.c.l.b16 %v26
  %v43 = vunpack.c.l.b16 %v27
  %v44 = vunpack.c.l.b16 %v28
  %v45 = vunpack.c.l.b16 %v29
  %v46 = vpack.c.b16 %v39, %v38
  %v47 = vpack.c.b16 %v41, %v40
  %v48 = vpack.c.b16 %v43, %v42
  %v49 = vpack.c.b16 %v45, %v44
  %vm54 = vcmask 523264
  %v56 = vsel %vm54, %v21, 0
  %58 = vmatpush.bf16.msra.mxu0 0
  %59 = vmatpush.bf16.msra.mxu0 0
  %60 = vmatpush.bf16.msra.mxu0 0
  %61 = vmatpush.bf16.msra.mxu0 0
  %62 = vmatpush.bf16.msra.mxu0 %v49
  %63 = vmatpush.bf16.msra.mxu0 %v48
  %64 = vmatpush.bf16.msra.mxu0 %v47
  %65 = vmatpush.bf16.msra.mxu0 %v46
  %66 = vmatmul.bf16.gmra.mxu0 %v56
  %v67 = vpop.f32.mrf.mxu0
  %v68 = vadd.f32 0.0, %v67
  %v69 = vpop.f32.mrf.mxu0
  %70 = vdwg.mxu0
  %v71 = vadd.f32 %v20, %v68
  %72 = vst [vmem:[#allocation2] sm:$0x3] %v71
  // Predicated region
  $region18: #{attention_pool2d_forward.4} parent=0 // pred_check
    %p73 = pneg %p15
  $region19: #{attention_pool2d_forward.4} parent=0 // pred_check_branch
    %75 = sbr.rel (%p73) target = $region21
  $region20: #{attention_pool2d_forward.4} parent=0 // pred_region
    %v76 = vld [vmem:[#allocation2] sm:$0x3]
    %v77 = vld [vmem:[%s2] sm:$0x1]
    %v79 = vperm.slane %v77, 0
    %v81 = vadd.f32 %v76, %v79
    %v82 = vpack.c.bf16 %v81, %v81
    %83 = vst [vmem:[%s3] sm:$0x1] %v82
  $region21: #{attention_pool2d_forward.4} parent=0 // pred_fallthru
    _
  // Predicated region
  $region22: #{attention_pool2d_forward.4} parent=0 // pred_check
    _
  $region23: #{attention_pool2d_forward.4} parent=0 // pred_check_branch
    %85 = sbr.rel (0) target = $region25
  $region24: #{attention_pool2d_forward.4} parent=0 // pred_region
    _
  $region25: #{attention_pool2d_forward.4} parent=0 // pred_fallthru
    _
  // Predicated region
  $region26: #{attention_pool2d_forward.4} parent=0 // pred_check
    _
  $region27: #{attention_pool2d_forward.4} parent=0 // pred_check_branch
    %87 = sbr.rel (0) target = $region29
  $region28: #{attention_pool2d_forward.4} parent=0 // pred_region
    _
  $region29: #{attention_pool2d_forward.4} parent=0 // pred_fallthru
    _

// kernel: attention_pool2d_forward.5
$region0: #{attention_pool2d_forward.5}
  #allocation0 [shape = 'u32[]', space=smem, size = 0x4, offset = 0x4, fixed_abs, tag = 'smem constant byte address 0x4 - core index']
  #allocation1 [shape = 'u32[72,128]{1,0:T(1,128)}', space=vmem, size = 0x9000, scoped, tag = 'internal scratch']
  #allocation2 [shape = 'f32[130,128]{1,0:T(8,128)}', space=vmem, size = 0x11000, scoped, tag = 'scratch operand']
  %s0 = inlined_call_operand.vmem [shape: bf16[130,64], index: 0, kind: input, shape index: {}]
  %s1 = inlined_call_operand.vmem [shape: bf16[64,128], index: 1, kind: input, shape index: {}]
  %s2 = inlined_call_operand.vmem [shape: f32[1,128], index: 2, kind: input, shape index: {}]
  %s3 = inlined_call_operand.vmem [shape: bf16[130,128], index: 3, kind: output, shape index: {}]
  %s4 = sld [smem:[#allocation0]]
  $region30: #{attention_pool2d_forward.5} parent=0
    _
  %s6 = ssub.s32 1, %s4
  %s7 = scalar_select 0, %s6, %s4
  // Predicated region
  $region2: #{attention_pool2d_forward.5} parent=0 // pred_check
    _
  $region3: #{attention_pool2d_forward.5} parent=0 // pred_check_branch
    %9 = sbr.rel (0) target = $region5
  $region4: #{attention_pool2d_forward.5} parent=0 // pred_region
    _
  $region5: #{attention_pool2d_forward.5} parent=0 // pred_fallthru
    _
  // Predicated region
  $region6: #{attention_pool2d_forward.5} parent=0 // pred_check
    _
  $region7: #{attention_pool2d_forward.5} parent=0 // pred_check_branch
    %11 = sbr.rel (0) target = $region9
  $region8: #{attention_pool2d_forward.5} parent=0 // pred_region
    _
  $region9: #{attention_pool2d_forward.5} parent=0 // pred_fallthru
    _
  // Predicated region
  $region10: #{attention_pool2d_forward.5} parent=0 // pred_check
    _
  $region11: #{attention_pool2d_forward.5} parent=0 // pred_check_branch
    %13 = sbr.rel (0) target = $region13
  $region12: #{attention_pool2d_forward.5} parent=0 // pred_region
    _
  $region13: #{attention_pool2d_forward.5} parent=0 // pred_fallthru
    _
  %p15 = scmp.eq.s32.totalorder 0, 0
  // Predicated region
  $region14: #{attention_pool2d_forward.5} parent=0 // pred_check
    %p16 = pneg %p15
  $region15: #{attention_pool2d_forward.5} parent=0 // pred_check_branch
    %18 = sbr.rel (%p16) target = $region17
  $region16: #{attention_pool2d_forward.5} parent=0 // pred_region
    %19 = vst [vmem:[#allocation2] sm:$0xff] 0.0
    %20 = vst [vmem:[#allocation2 + $0x8] sm:$0xff] 0.0
    %21 = vst [vmem:[#allocation2 + $0x10] sm:$0xff] 0.0
    %22 = vst [vmem:[#allocation2 + $0x18] sm:$0xff] 0.0
    %23 = vst [vmem:[#allocation2 + $0x20] sm:$0xff] 0.0
    %24 = vst [vmem:[#allocation2 + $0x28] sm:$0xff] 0.0
    %25 = vst [vmem:[#allocation2 + $0x30] sm:$0xff] 0.0
    %26 = vst [vmem:[#allocation2 + $0x38] sm:$0xff] 0.0
    %27 = vst [vmem:[#allocation2 + $0x40] sm:$0xff] 0.0
    %28 = vst [vmem:[#allocation2 + $0x48] sm:$0xff] 0.0
    %29 = vst [vmem:[#allocation2 + $0x50] sm:$0xff] 0.0
    %30 = vst [vmem:[#allocation2 + $0x58] sm:$0xff] 0.0
    %31 = vst [vmem:[#allocation2 + $0x60] sm:$0xff] 0.0
    %32 = vst [vmem:[#allocation2 + $0x68] sm:$0xff] 0.0
    %33 = vst [vmem:[#allocation2 + $0x70] sm:$0xff] 0.0
    %34 = vst [vmem:[#allocation2 + $0x78] sm:$0xff] 0.0
    %35 = vst [vmem:[#allocation2 + $0x80] sm:$0x3] 0.0
  $region17: #{attention_pool2d_forward.5} parent=0 // pred_fallthru
    _
  %v36 = vld [vmem:[#allocation2] sm:$0xff]
  %v37 = vld [vmem:[#allocation2 + $0x8] sm:$0xff]
  %v38 = vld [vmem:[#allocation2 + $0x10] sm:$0xff]
  %v39 = vld [vmem:[#allocation2 + $0x18] sm:$0xff]
  %v40 = vld [vmem:[#allocation2 + $0x20] sm:$0xff]
  %v41 = vld [vmem:[#allocation2 + $0x28] sm:$0xff]
  %v42 = vld [vmem:[#allocation2 + $0x30] sm:$0xff]
  %v43 = vld [vmem:[#allocation2 + $0x38] sm:$0xff]
  %v44 = vld [vmem:[#allocation2 + $0x40] sm:$0xff]
  %v45 = vld [vmem:[#allocation2 + $0x48] sm:$0xff]
  %v46 = vld [vmem:[#allocation2 + $0x50] sm:$0xff]
  %v47 = vld [vmem:[#allocation2 + $0x58] sm:$0xff]
  %v48 = vld [vmem:[#allocation2 + $0x60] sm:$0xff]
  %v49 = vld [vmem:[#allocation2 + $0x68] sm:$0xff]
  %v50 = vld [vmem:[#allocation2 + $0x70] sm:$0xff]
  %v51 = vld [vmem:[#allocation2 + $0x78] sm:$0xff]
  %v52 = vld [vmem:[#allocation2 + $0x80] sm:$0x3]
  %v53 = vld [vmem:[%s0] sm:$0xf]
  %v54 = vld [vmem:[%s0 + $0x4] sm:$0xf]
  %v55 = vld [vmem:[%s0 + $0x8] sm:$0xf]
  %v56 = vld [vmem:[%s0 + $0xc] sm:$0xf]
  %v57 = vld [vmem:[%s0 + $0x10] sm:$0xf]
  %v58 = vld [vmem:[%s0 + $0x14] sm:$0xf]
  %v59 = vld [vmem:[%s0 + $0x18] sm:$0xf]
  %v60 = vld [vmem:[%s0 + $0x1c] sm:$0xf]
  %v61 = vld [vmem:[%s0 + $0x20] sm:$0xf]
  %v62 = vld [vmem:[%s0 + $0x24] sm:$0xf]
  %v63 = vld [vmem:[%s0 + $0x28] sm:$0xf]
  %v64 = vld [vmem:[%s0 + $0x2c] sm:$0xf]
  %v65 = vld [vmem:[%s0 + $0x30] sm:$0xf]
  %v66 = vld [vmem:[%s0 + $0x34] sm:$0xf]
  %v67 = vld [vmem:[%s0 + $0x38] sm:$0xf]
  %v68 = vld [vmem:[%s0 + $0x3c] sm:$0xf]
  %v69 = vld [vmem:[%s0 + $0x40] sm:$0x1]
  %v70 = vld [vmem:[%s1] sm:$0xf]
  %v71 = vld [vmem:[%s1 + $0x4] sm:$0xf]
  %v72 = vld [vmem:[%s1 + $0x8] sm:$0xf]
  %v73 = vld [vmem:[%s1 + $0xc] sm:$0xf]
  %v74 = vld [vmem:[%s1 + $0x10] sm:$0xf]
  %v75 = vld [vmem:[%s1 + $0x14] sm:$0xf]
  %v76 = vld [vmem:[%s1 + $0x18] sm:$0xf]
  %v77 = vld [vmem:[%s1 + $0x1c] sm:$0xf]
  %v95 = vunpack.c.l.b16 %v53
  %v96 = vunpack.c.l.b16 %v54
  %v97 = vunpack.c.l.b16 %v55
  %v98 = vunpack.c.l.b16 %v56
  %v99 = vunpack.c.l.b16 %v57
  %v100 = vunpack.c.l.b16 %v58
  %v101 = vunpack.c.l.b16 %v59
  %v102 = vunpack.c.l.b16 %v60
  %v103 = vunpack.c.l.b16 %v61
  %v104 = vunpack.c.l.b16 %v62
  %v105 = vunpack.c.l.b16 %v63
  %v106 = vunpack.c.l.b16 %v64
  %v107 = vunpack.c.l.b16 %v65
  %v108 = vunpack.c.l.b16 %v66
  %v109 = vunpack.c.l.b16 %v67
  %v110 = vunpack.c.l.b16 %v68
  %v111 = vunpack.c.l.b16 %v69
  %v112 = vpack.c.b16 %v96, %v95
  %v113 = vpack.c.b16 %v98, %v97
  %v114 = vpack.c.b16 %v100, %v99
  %v115 = vpack.c.b16 %v102, %v101
  %v116 = vpack.c.b16 %v104, %v103
  %v117 = vpack.c.b16 %v106, %v105
  %v118 = vpack.c.b16 %v108, %v107
  %v119 = vpack.c.b16 %v110, %v109
  %v120 = vpack.c.b16 %v111, %v111
  %v129 = vunpack.c.l.b16 %v70
  %v130 = vunpack.c.l.b16 %v71
  %v131 = vunpack.c.l.b16 %v72
  %v132 = vunpack.c.l.b16 %v73
  %v133 = vunpack.c.l.b16 %v74
  %v134 = vunpack.c.l.b16 %v75
  %v135 = vunpack.c.l.b16 %v76
  %v136 = vunpack.c.l.b16 %v77
  %v137 = vpack.c.b16 %v130, %v129
  %v138 = vpack.c.b16 %v132, %v131
  %v139 = vpack.c.b16 %v134, %v133
  %v140 = vpack.c.b16 %v136, %v135
  %vm145 = vcmask 523264
  %v147 = vsel %vm145, %v112, 0
  %v150 = vsel %vm145, %v113, 0
  %v153 = vsel %vm145, %v114, 0
  %v156 = vsel %vm145, %v115, 0
  %v159 = vsel %vm145, %v116, 0
  %v162 = vsel %vm145, %v117, 0
  %v165 = vsel %vm145, %v118, 0
  %v168 = vsel %vm145, %v119, 0
  %v171 = vsel %vm145, %v120, 0
  %173 = vmatpush.bf16.msra.mxu0 0
  %174 = vmatpush.bf16.msra.mxu0 0
  %175 = vmatpush.bf16.msra.mxu0 0
  %176 = vmatpush.bf16.msra.mxu0 0
  %177 = vmatpush.bf16.msra.mxu0 %v140
  %178 = vmatpush.bf16.msra.mxu0 %v139
  %179 = vmatpush.bf16.msra.mxu0 %v138
  %180 = vmatpush.bf16.msra.mxu0 %v137
  %181 = vmatmul.bf16.gmra.mxu0 %v147
  %v182 = vpop.f32.mrf.mxu0
  %v183 = vadd.f32 0.0, %v182
  %v184 = vpop.f32.mrf.mxu0
  %v185 = vadd.f32 0.0, %v184
  %186 = vmatmul.bf16.gmra.mxu0 %v150
  %v187 = vpop.f32.mrf.mxu0
  %v188 = vadd.f32 0.0, %v187
  %v189 = vpop.f32.mrf.mxu0
  %v190 = vadd.f32 0.0, %v189
  %191 = vmatmul.bf16.gmra.mxu0 %v153
  %v192 = vpop.f32.mrf.mxu0
  %v193 = vadd.f32 0.0, %v192
  %v194 = vpop.f32.mrf.mxu0
  %v195 = vadd.f32 0.0, %v194
  %196 = vmatmul.bf16.gmra.mxu0 %v156
  %v197 = vpop.f32.mrf.mxu0
  %v198 = vadd.f32 0.0, %v197
  %v199 = vpop.f32.mrf.mxu0
  %v200 = vadd.f32 0.0, %v199
  %201 = vmatmul.bf16.gmra.mxu0 %v159
  %v202 = vpop.f32.mrf.mxu0
  %v203 = vadd.f32 0.0, %v202
  %v204 = vpop.f32.mrf.mxu0
  %v205 = vadd.f32 0.0, %v204
  %206 = vmatmul.bf16.gmra.mxu0 %v162
  %v207 = vpop.f32.mrf.mxu0
  %v208 = vadd.f32 0.0, %v207
  %v209 = vpop.f32.mrf.mxu0
  %v210 = vadd.f32 0.0, %v209
  %211 = vmatmul.bf16.gmra.mxu0 %v165
  %v212 = vpop.f32.mrf.mxu0
  %v213 = vadd.f32 0.0, %v212
  %v214 = vpop.f32.mrf.mxu0
  %v215 = vadd.f32 0.0, %v214
  %216 = vmatmul.bf16.gmra.mxu0 %v168
  %v217 = vpop.f32.mrf.mxu0
  %v218 = vadd.f32 0.0, %v217
  %v219 = vpop.f32.mrf.mxu0
  %v220 = vadd.f32 0.0, %v219
  %221 = vmatmul.bf16.gmra.mxu0 %v171
  %v222 = vpop.f32.mrf.mxu0
  %v223 = vadd.f32 0.0, %v222
  %v224 = vpop.f32.mrf.mxu0
  %225 = vdwg.mxu0
  %v226 = vadd.f32 %v36, %v183
  %v227 = vadd.f32 %v37, %v185
  %v228 = vadd.f32 %v38, %v188
  %v229 = vadd.f32 %v39, %v190
  %v230 = vadd.f32 %v40, %v193
  %v231 = vadd.f32 %v41, %v195
  %v232 = vadd.f32 %v42, %v198
  %v233 = vadd.f32 %v43, %v200
  %v234 = vadd.f32 %v44, %v203
  %v235 = vadd.f32 %v45, %v205
  %v236 = vadd.f32 %v46, %v208
  %v237 = vadd.f32 %v47, %v210
  %v238 = vadd.f32 %v48, %v213
  %v239 = vadd.f32 %v49, %v215
  %v240 = vadd.f32 %v50, %v218
  %v241 = vadd.f32 %v51, %v220
  %v242 = vadd.f32 %v52, %v223
  %243 = vst [vmem:[#allocation2] sm:$0xff] %v226
  %244 = vst [vmem:[#allocation2 + $0x8] sm:$0xff] %v227
  %245 = vst [vmem:[#allocation2 + $0x10] sm:$0xff] %v228
  %246 = vst [vmem:[#allocation2 + $0x18] sm:$0xff] %v229
  %247 = vst [vmem:[#allocation2 + $0x20] sm:$0xff] %v230
  %248 = vst [vmem:[#allocation2 + $0x28] sm:$0xff] %v231
  %249 = vst [vmem:[#allocation2 + $0x30] sm:$0xff] %v232
  %250 = vst [vmem:[#allocation2 + $0x38] sm:$0xff] %v233
  %251 = vst [vmem:[#allocation2 + $0x40] sm:$0xff] %v234
  %252 = vst [vmem:[#allocation2 + $0x48] sm:$0xff] %v235
  %253 = vst [vmem:[#allocation2 + $0x50] sm:$0xff] %v236
  %254 = vst [vmem:[#allocation2 + $0x58] sm:$0xff] %v237
  %255 = vst [vmem:[#allocation2 + $0x60] sm:$0xff] %v238
  %256 = vst [vmem:[#allocation2 + $0x68] sm:$0xff] %v239
  %257 = vst [vmem:[#allocation2 + $0x70] sm:$0xff] %v240
  %258 = vst [vmem:[#allocation2 + $0x78] sm:$0xff] %v241
  %259 = vst [vmem:[#allocation2 + $0x80] sm:$0x3] %v242
  // Predicated region
  $region18: #{attention_pool2d_forward.5} parent=0 // pred_check
    %p260 = pneg %p15
  $region19: #{attention_pool2d_forward.5} parent=0 // pred_check_branch
    %262 = sbr.rel (%p260) target = $region21
  $region20: #{attention_pool2d_forward.5} parent=0 // pred_region
    %v263 = vld [vmem:[#allocation2] sm:$0xff]
    %v264 = vld [vmem:[#allocation2 + $0x8] sm:$0xff]
    %v265 = vld [vmem:[#allocation2 + $0x10] sm:$0xff]
    %v266 = vld [vmem:[#allocation2 + $0x18] sm:$0xff]
    %v267 = vld [vmem:[#allocation2 + $0x20] sm:$0xff]
    %v268 = vld [vmem:[#allocation2 + $0x28] sm:$0xff]
    %v269 = vld [vmem:[#allocation2 + $0x30] sm:$0xff]
    %v270 = vld [vmem:[#allocation2 + $0x38] sm:$0xff]
    %v271 = vld [vmem:[#allocation2 + $0x40] sm:$0xff]
    %v272 = vld [vmem:[#allocation2 + $0x48] sm:$0xff]
    %v273 = vld [vmem:[#allocation2 + $0x50] sm:$0xff]
    %v274 = vld [vmem:[#allocation2 + $0x58] sm:$0xff]
    %v275 = vld [vmem:[#allocation2 + $0x60] sm:$0xff]
    %v276 = vld [vmem:[#allocation2 + $0x68] sm:$0xff]
    %v277 = vld [vmem:[#allocation2 + $0x70] sm:$0xff]
    %v278 = vld [vmem:[#allocation2 + $0x78] sm:$0xff]
    %v279 = vld [vmem:[#allocation2 + $0x80] sm:$0x3]
    %v280 = vld [vmem:[%s2] sm:$0x1]
    %v282 = vperm.slane %v280, 0
    %v284 = vadd.f32 %v263, %v282
    %v285 = vadd.f32 %v264, %v282
    %v286 = vadd.f32 %v265, %v282
    %v287 = vadd.f32 %v266, %v282
    %v288 = vadd.f32 %v267, %v282
    %v289 = vadd.f32 %v268, %v282
    %v290 = vadd.f32 %v269, %v282
    %v291 = vadd.f32 %v270, %v282
    %v292 = vadd.f32 %v271, %v282
    %v293 = vadd.f32 %v272, %v282
    %v294 = vadd.f32 %v273, %v282
    %v295 = vadd.f32 %v274, %v282
    %v296 = vadd.f32 %v275, %v282
    %v297 = vadd.f32 %v276, %v282
    %v298 = vadd.f32 %v277, %v282
    %v299 = vadd.f32 %v278, %v282
    %v300 = vadd.f32 %v279, %v282
    %v301 = vpack.c.bf16 %v284, %v284
    %v302 = vpack.c.bf16 %v285, %v285
    %v303 = vpack.c.bf16 %v286, %v286
    %v304 = vpack.c.bf16 %v287, %v287
    %v305 = vpack.c.bf16 %v288, %v288
    %v306 = vpack.c.bf16 %v289, %v289
    %v307 = vpack.c.bf16 %v290, %v290
    %v308 = vpack.c.bf16 %v291, %v291
    %v309 = vpack.c.bf16 %v292, %v292
    %v310 = vpack.c.bf16 %v293, %v293
    %v311 = vpack.c.bf16 %v294, %v294
    %v312 = vpack.c.bf16 %v295, %v295
    %v313 = vpack.c.bf16 %v296, %v296
    %v314 = vpack.c.bf16 %v297, %v297
    %v315 = vpack.c.bf16 %v298, %v298
    %v316 = vpack.c.bf16 %v299, %v299
    %v317 = vpack.c.bf16 %v300, %v300
    %318 = vst [vmem:[%s3] sm:$0xf] %v301
    %319 = vst [vmem:[%s3 + $0x4] sm:$0xf] %v302
    %320 = vst [vmem:[%s3 + $0x8] sm:$0xf] %v303
    %321 = vst [vmem:[%s3 + $0xc] sm:$0xf] %v304
    %322 = vst [vmem:[%s3 + $0x10] sm:$0xf] %v305
    %323 = vst [vmem:[%s3 + $0x14] sm:$0xf] %v306
    %324 = vst [vmem:[%s3 + $0x18] sm:$0xf] %v307
    %325 = vst [vmem:[%s3 + $0x1c] sm:$0xf] %v308
    %326 = vst [vmem:[%s3 + $0x20] sm:$0xf] %v309
    %327 = vst [vmem:[%s3 + $0x24] sm:$0xf] %v310
    %328 = vst [vmem:[%s3 + $0x28] sm:$0xf] %v311
    %329 = vst [vmem:[%s3 + $0x2c] sm:$0xf] %v312
    %330 = vst [vmem:[%s3 + $0x30] sm:$0xf] %v313
    %331 = vst [vmem:[%s3 + $0x34] sm:$0xf] %v314
    %332 = vst [vmem:[%s3 + $0x38] sm:$0xf] %v315
    %333 = vst [vmem:[%s3 + $0x3c] sm:$0xf] %v316
    %334 = vst [vmem:[%s3 + $0x40] sm:$0x1] %v317
  $region21: #{attention_pool2d_forward.5} parent=0 // pred_fallthru
    _
  // Predicated region
  $region22: #{attention_pool2d_forward.5} parent=0 // pred_check
    _
  $region23: #{attention_pool2d_forward.5} parent=0 // pred_check_branch
    %336 = sbr.rel (0) target = $region25
  $region24: #{attention_pool2d_forward.5} parent=0 // pred_region
    _
  $region25: #{attention_pool2d_forward.5} parent=0 // pred_fallthru
    _
  // Predicated region
  $region26: #{attention_pool2d_forward.5} parent=0 // pred_check
    _
  $region27: #{attention_pool2d_forward.5} parent=0 // pred_check_branch
    %338 = sbr.rel (0) target = $region29
  $region28: #{attention_pool2d_forward.5} parent=0 // pred_region
    _
  $region29: #{attention_pool2d_forward.5} parent=0 // pred_fallthru
    _

// kernel: attention_pool2d_forward.7
$region0: #{attention_pool2d_forward.7}
  #allocation0 [shape = 'u32[]', space=smem, size = 0x4, offset = 0x4, fixed_abs, tag = 'smem constant byte address 0x4 - core index']
  #allocation1 [shape = 'u32[72,128]{1,0:T(1,128)}', space=vmem, size = 0x9000, scoped, tag = 'internal scratch']
  #allocation2 [shape = 'f32[2,128]{1,0:T(2,128)}', space=vmem, size = 0x400, scoped, tag = 'scratch operand']
  %s0 = inlined_call_operand.vmem [shape: bf16[2,64], index: 0, kind: input, shape index: {}]
  %s1 = inlined_call_operand.vmem [shape: bf16[64,128], index: 1, kind: input, shape index: {}]
  %s2 = inlined_call_operand.vmem [shape: f32[1,128], index: 2, kind: input, shape index: {}]
  %s3 = inlined_call_operand.hbm [shape: f32[2,128], index: 3, kind: output, shape index: {}]
  %s4 = sld [smem:[#allocation0]]
  $region30: #{attention_pool2d_forward.7} parent=0
    _
  %s6 = ssub.s32 1, %s4
  %s7 = scalar_select 0, %s6, %s4
  $region1: #{attention_pool2d_forward.7} parent=0
    #allocation3 [shape = 'u8[1024]{0}', space=vmem, size = 0x400, scoped, tag = 'output window, operand 0, single buffered']
    #allocation4 [shape = 's32[1]{0}', space=sflag, size = 0x4, scoped, tag = 'scoped memory for attention_pool2d_forward.7']
    %8 = vsyncpa [#allocation4], 0
    // Predicated region
    $region2: #{attention_pool2d_forward.7} parent=1 // pred_check
      _
    $region3: #{attention_pool2d_forward.7} parent=1 // pred_check_branch
      %10 = sbr.rel (0) target = $region5
    $region4: #{attention_pool2d_forward.7} parent=1 // pred_region
      _
    $region5: #{attention_pool2d_forward.7} parent=1 // pred_fallthru
      _
    // Predicated region
    $region6: #{attention_pool2d_forward.7} parent=1 // pred_check
      _
    $region7: #{attention_pool2d_forward.7} parent=1 // pred_check_branch
      %12 = sbr.rel (0) target = $region9
    $region8: #{attention_pool2d_forward.7} parent=1 // pred_region
      _
    $region9: #{attention_pool2d_forward.7} parent=1 // pred_fallthru
      _
    // Predicated region
    $region10: #{attention_pool2d_forward.7} parent=1 // pred_check
      _
    $region11: #{attention_pool2d_forward.7} parent=1 // pred_check_branch
      %14 = sbr.rel (0) target = $region13
    $region12: #{attention_pool2d_forward.7} parent=1 // pred_region
      _
    $region13: #{attention_pool2d_forward.7} parent=1 // pred_fallthru
      _
    %p16 = scmp.eq.s32.totalorder 0, 0
    // Predicated region
    $region14: #{attention_pool2d_forward.7} parent=1 // pred_check
      %p17 = pneg %p16
    $region15: #{attention_pool2d_forward.7} parent=1 // pred_check_branch
      %19 = sbr.rel (%p17) target = $region17
    $region16: #{attention_pool2d_forward.7} parent=1 // pred_region
      %20 = vst [vmem:[#allocation2] sm:$0x3] 0.0
    $region17: #{attention_pool2d_forward.7} parent=1 // pred_fallthru
      _
    %v21 = vld [vmem:[#allocation2] sm:$0x3]
    %v22 = vld [vmem:[%s0] sm:$0x1]
    %v23 = vld [vmem:[%s1] sm:$0xf]
    %v24 = vld [vmem:[%s1 + $0x4] sm:$0xf]
    %v25 = vld [vmem:[%s1 + $0x8] sm:$0xf]
    %v26 = vld [vmem:[%s1 + $0xc] sm:$0xf]
    %v27 = vld [vmem:[%s1 + $0x10] sm:$0xf]
    %v28 = vld [vmem:[%s1 + $0x14] sm:$0xf]
    %v29 = vld [vmem:[%s1 + $0x18] sm:$0xf]
    %v30 = vld [vmem:[%s1 + $0x1c] sm:$0xf]
    %v39 = vunpack.c.l.b16 %v23
    %v40 = vunpack.c.l.b16 %v24
    %v41 = vunpack.c.l.b16 %v25
    %v42 = vunpack.c.l.b16 %v26
    %v43 = vunpack.c.l.b16 %v27
    %v44 = vunpack.c.l.b16 %v28
    %v45 = vunpack.c.l.b16 %v29
    %v46 = vunpack.c.l.b16 %v30
    %v47 = vpack.c.b16 %v40, %v39
    %v48 = vpack.c.b16 %v42, %v41
    %v49 = vpack.c.b16 %v44, %v43
    %v50 = vpack.c.b16 %v46, %v45
    %vm55 = vcmask 523264
    %v57 = vsel %vm55, %v22, 0
    %59 = vmatpush.bf16.msra.mxu0 0
    %60 = vmatpush.bf16.msra.mxu0 0
    %61 = vmatpush.bf16.msra.mxu0 0
    %62 = vmatpush.bf16.msra.mxu0 0
    %63 = vmatpush.bf16.msra.mxu0 %v50
    %64 = vmatpush.bf16.msra.mxu0 %v49
    %65 = vmatpush.bf16.msra.mxu0 %v48
    %66 = vmatpush.bf16.msra.mxu0 %v47
    %67 = vmatmul.bf16.gmra.mxu0 %v57
    %v68 = vpop.f32.mrf.mxu0
    %v69 = vadd.f32 0.0, %v68
    %v70 = vpop.f32.mrf.mxu0
    %71 = vdwg.mxu0
    %v72 = vadd.f32 %v21, %v69
    %73 = vst [vmem:[#allocation2] sm:$0x3] %v72
    // Predicated region
    $region18: #{attention_pool2d_forward.7} parent=1 // pred_check
      %p74 = pneg %p16
    $region19: #{attention_pool2d_forward.7} parent=1 // pred_check_branch
      %76 = sbr.rel (%p74) target = $region21
    $region20: #{attention_pool2d_forward.7} parent=1 // pred_region
      %v77 = vld [vmem:[#allocation2] sm:$0x3]
      %v78 = vld [vmem:[%s2] sm:$0x1]
      %v80 = vperm.slane %v78, 0
      %v82 = vadd.f32 %v77, %v80
      %83 = vst [vmem:[#allocation3] sm:$0x3] %v82
    $region21: #{attention_pool2d_forward.7} parent=1 // pred_fallthru
      _
    // Predicated region
    $region22: #{attention_pool2d_forward.7} parent=1 // pred_check
      _
    $region23: #{attention_pool2d_forward.7} parent=1 // pred_check_branch
      %85 = sbr.rel (0) target = $region25
    $region24: #{attention_pool2d_forward.7} parent=1 // pred_region
      %87 = vsyncadd [#allocation4], 0
      %s89 = sshll.u32 [#allocation3], 4
      %s90 = int_to_ptr.vmem [resolvable:$true] %s89
      %s91 = sshll.u32 %s3, 4
      %s92 = int_to_ptr.hbm [resolvable:$true] %s91
      %94 = dma.vmem_to_hbm [thread:$0]  %s90, 32, %s92, [#allocation4]
    $region25: #{attention_pool2d_forward.7} parent=1 // pred_fallthru
      _
    // Predicated region
    $region26: #{attention_pool2d_forward.7} parent=1 // pred_check
      _
    $region27: #{attention_pool2d_forward.7} parent=1 // pred_check_branch
      %96 = sbr.rel (0) target = $region29
    $region28: #{attention_pool2d_forward.7} parent=1 // pred_region
      %98 = dma.done [#allocation4], 32
    $region29: #{attention_pool2d_forward.7} parent=1 // pred_fallthru
      _
    %99 = vsyncpa [#allocation4], 1

// kernel: attention_pool2d_forward.6
$region0: #{attention_pool2d_forward.6}
  #allocation0 [shape = 'u32[]', space=smem, size = 0x4, offset = 0x4, fixed_abs, tag = 'smem constant byte address 0x4 - core index']
  #allocation1 [shape = 'u32[72,128]{1,0:T(1,128)}', space=vmem, size = 0x9000, scoped, tag = 'internal scratch']
  %s0 = inlined_call_operand.vmem [shape: bf16[2,1,64], index: 0, kind: input, shape index: {}]
  %s1 = inlined_call_operand.vmem [shape: bf16[2,65,128], index: 1, kind: input, shape index: {}]
  %s2 = inlined_call_operand.vmem [shape: bf16[2,1,64], index: 2, kind: output, shape index: {}]
  %s3 = sld [smem:[#allocation0]]
  $region41: #{attention_pool2d_forward.6} parent=0
    _
  %s5 = ssub.s32 1, %s3
  %s6 = scalar_select 0, %s5, %s3
  loop: start=0, step=1, limit=4
  $region2: #{attention_pool2d_forward.6} parent=0 // loop_pre_header
    _
  $region3: #{attention_pool2d_forward.6} parent=0 // loop_header
    %s8 = sphi 0, %s12
    %p9 = scmp.ge.s32.totalorder %s8, 4
    %s18 = sphi 0, %s20
    %s21 = sphi 0, %s18
    %s22 = sphi 0, %s21
    %s38 = sphi 0, %s22
    %s44 = sphi 0, %s46
    %s47 = sphi 0, %s44
    %s48 = sphi 0, %s47
    %s64 = sphi 0, %s48
    %s70 = sphi 0, %s72
    %s73 = sphi 0, %s70
    %s74 = sphi 0, %s73
    %s90 = sphi 0, %s74
  $region4: #{attention_pool2d_forward.6} parent=0 // loop_header_branch
    %11 = sbr.rel (%p9) target = $region8
  $region5: #{attention_pool2d_forward.6} parent=0 // loop_body
    %s13 = ssub.s32 %s8, 1
    %s14 = ssub.s32 %s8, 2
    %s15 = sadd.s32 %s8, 1
    %s16 = ssub.s32 %s8, %s15
    %p17 = scmp.eq.s32.totalorder %s16, 0
    %s19 = sadd.s32 %s18, 1
    %s20 = scalar_select %p17, %s18, %s19
    %p23 = pneg %p17
    %p24 = scmp.eq.s32.totalorder %s8, 1
    %p25 = por %p23, %p24
    %p26 = scmp.ne.s32.totalorder %s18, %s21
    %p27 = scmp.eq.s32.totalorder %s8, 0
    %p28 = por %p26, %p27
    %p29 = scmp.ne.s32.totalorder %s18, %s21
    %p30 = scmp.eq.s32.totalorder %s13, 1
    %p31 = por %p29, %p30
    %p32 = scmp.ne.s32.totalorder %s21, %s22
    %p33 = scmp.eq.s32.totalorder %s13, 0
    %p34 = por %p32, %p33
    %p35 = scmp.ne.s32.totalorder %s21, %s22
    %p36 = scmp.eq.s32.totalorder %s14, 1
    %p37 = por %p35, %p36
    %p39 = scmp.ne.s32.totalorder %s22, %s38
    %p40 = scmp.eq.s32.totalorder %s14, 0
    %p41 = por %p39, %p40
    %s42 = ssub.s32 %s8, %s15
    %p43 = scmp.eq.s32.totalorder %s42, 0
    %s45 = sadd.s32 %s44, 1
    %s46 = scalar_select %p43, %s44, %s45
    %p49 = pneg %p43
    %p50 = scmp.eq.s32.totalorder %s8, 1
    %p51 = por %p49, %p50
    %p52 = scmp.ne.s32.totalorder %s44, %s47
    %p53 = scmp.eq.s32.totalorder %s8, 0
    %p54 = por %p52, %p53
    %p55 = scmp.ne.s32.totalorder %s44, %s47
    %p56 = scmp.eq.s32.totalorder %s13, 1
    %p57 = por %p55, %p56
    %p58 = scmp.ne.s32.totalorder %s47, %s48
    %p59 = scmp.eq.s32.totalorder %s13, 0
    %p60 = por %p58, %p59
    %p61 = scmp.ne.s32.totalorder %s47, %s48
    %p62 = scmp.eq.s32.totalorder %s14, 1
    %p63 = por %p61, %p62
    %p65 = scmp.ne.s32.totalorder %s48, %s64
    %p66 = scmp.eq.s32.totalorder %s14, 0
    %p67 = por %p65, %p66
    %s68 = ssub.s32 %s8, %s15
    %p69 = scmp.eq.s32.totalorder %s68, 0
    %s71 = sadd.s32 %s70, 1
    %s72 = scalar_select %p69, %s70, %s71
    %p75 = pneg %p69
    %p76 = scmp.eq.s32.totalorder %s8, 1
    %p77 = por %p75, %p76
    %p78 = scmp.ne.s32.totalorder %s70, %s73
    %p79 = scmp.eq.s32.totalorder %s8, 0
    %p80 = por %p78, %p79
    %p81 = scmp.ne.s32.totalorder %s70, %s73
    %p82 = scmp.eq.s32.totalorder %s13, 1
    %p83 = por %p81, %p82
    %p84 = scmp.ne.s32.totalorder %s73, %s74
    %p85 = scmp.eq.s32.totalorder %s13, 0
    %p86 = por %p84, %p85
    %p87 = scmp.ne.s32.totalorder %s73, %s74
    %p88 = scmp.eq.s32.totalorder %s14, 1
    %p89 = por %p87, %p88
    %p91 = scmp.ne.s32.totalorder %s74, %s90
    %p92 = scmp.eq.s32.totalorder %s14, 0
    %p93 = por %p91, %p92
    %p94 = scmp.le.s32.totalorder 1, %s8
    %p95 = scmp.lt.s32.totalorder %s8, 3
    %p96 = pnand %p94, %p95
    %p97 = pneg %p96
    // Predicated region
    $region9: #{attention_pool2d_forward.6} parent=5 // pred_check
      _
    $region10: #{attention_pool2d_forward.6} parent=5 // pred_check_branch
      %99 = sbr.rel (%p96) target = $region12
    $region11: #{attention_pool2d_forward.6} parent=5 // pred_region
      %s100 = ssub.s32 %s8, 1
    $region12: #{attention_pool2d_forward.6} parent=5 // pred_fallthru
      _
    %p101 = scmp.lt.s32.totalorder %s8, 2
    // Predicated region
    $region13: #{attention_pool2d_forward.6} parent=5 // pred_check
      %p102 = pneg %p101
    $region14: #{attention_pool2d_forward.6} parent=5 // pred_check_branch
      %104 = sbr.rel (%p102) target = $region16
    $region15: #{attention_pool2d_forward.6} parent=5 // pred_region
      // Predicated region
      $region17: #{attention_pool2d_forward.6} parent=15 // pred_check
        %p105 = pneg %p28
      $region18: #{attention_pool2d_forward.6} parent=15 // pred_check_branch
        %107 = sbr.rel (%p105) target = $region20
      $region19: #{attention_pool2d_forward.6} parent=15 // pred_region
        %p108 = scmp.lt.s32.totalorder %s8, 1
        %s109 = scalar_select %p108, %s8, 1
        %s110 = scalar_lea.vmem %s0, %s109
      $region20: #{attention_pool2d_forward.6} parent=15 // pred_fallthru
        _
      // Predicated region
      $region21: #{attention_pool2d_forward.6} parent=15 // pred_check
        %p111 = pneg %p54
      $region22: #{attention_pool2d_forward.6} parent=15 // pred_check_branch
        %113 = sbr.rel (%p111) target = $region24
      $region23: #{attention_pool2d_forward.6} parent=15 // pred_region
        %p114 = scmp.lt.s32.totalorder %s8, 1
        %s115 = scalar_select %p114, %s8, 1
        %s116 = smul.addr %s115, 9
        %s117 = smul.addr %s116, 4
        %s118 = scalar_lea.vmem %s1, %s117
      $region24: #{attention_pool2d_forward.6} parent=15 // pred_fallthru
        _
    $region16: #{attention_pool2d_forward.6} parent=5 // pred_fallthru
      _
    %p119 = scmp.le.s32.totalorder 1, %s8
    %p120 = scmp.lt.s32.totalorder %s8, 3
    %p121 = pnand %p119, %p120
    %p122 = pneg %p121
    // Predicated region
    $region25: #{attention_pool2d_forward.6} parent=5 // pred_check
      _
    $region26: #{attention_pool2d_forward.6} parent=5 // pred_check_branch
      %124 = sbr.rel (%p121) target = $region28
    $region27: #{attention_pool2d_forward.6} parent=5 // pred_region
      %s125 = ssub.s32 %s8, 1
      %p126 = scmp.lt.s32.totalorder %s13, 1
      %s127 = scalar_select %p126, %s13, 1
      %s128 = scalar_lea.vmem %s0, %s127
      %p129 = pneg %p34
      %p130 = pneg %p31
      %p131 = scmp.lt.s32.totalorder %s13, 1
      %s132 = scalar_select %p131, %s13, 1
      %s133 = smul.addr %s132, 9
      %s134 = smul.addr %s133, 4
      %s135 = scalar_lea.vmem %s1, %s134
      %p136 = pneg %p60
      %p137 = pneg %p57
      %p138 = pneg %p86
      %p139 = pneg %p83
      %p140 = scmp.lt.s32.totalorder %s13, 1
      %s141 = scalar_select %p140, %s13, 1
      %s142 = scalar_lea.vmem %s2, %s141
      %p143 = scmp.lt.s32.totalorder %s13, 1
      %s144 = scalar_select %p143, %s13, 1
      %s145 = scalar_lea.vmem %s0, %s144
      %p146 = scmp.lt.s32.totalorder %s13, 1
      %s147 = scalar_select %p146, %s13, 1
      %s148 = smul.addr %s147, 9
      %s149 = smul.addr %s148, 4
      %s150 = scalar_lea.vmem %s1, %s149
      %p151 = scmp.lt.s32.totalorder %s13, 1
      %s152 = scalar_select %p151, %s13, 1
      %s153 = scalar_lea.vmem %s2, %s152
      %v155 = vld [vmem:[%s145] sm:$0x1]
      %v156 = vld [vmem:[%s150] sm:$0xf]
      %v157 = vld [vmem:[%s150 + $0x4] sm:$0xf]
      %v158 = vld [vmem:[%s150 + $0x8] sm:$0xf]
      %v159 = vld [vmem:[%s150 + $0xc] sm:$0xf]
      %v160 = vld [vmem:[%s150 + $0x10] sm:$0xf]
      %v161 = vld [vmem:[%s150 + $0x14] sm:$0xf]
      %v162 = vld [vmem:[%s150 + $0x18] sm:$0xf]
      %v163 = vld [vmem:[%s150 + $0x1c] sm:$0xf]
      %v164 = vld [vmem:[%s150 + $0x20] sm:$0x1]
      %v174 = vunpack.c.l.b16 %v156
      %v175 = vunpack.c.l.b16 %v157
      %v176 = vunpack.c.l.b16 %v158
      %v177 = vunpack.c.l.b16 %v159
      %v178 = vunpack.c.l.b16 %v160
      %v179 = vunpack.c.l.b16 %v161
      %v180 = vunpack.c.l.b16 %v162
      %v181 = vunpack.c.l.b16 %v163
      %v182 = vunpack.c.l.b16 %v164
      %v183 = vpack.c.b16 %v175, %v174
      %v184 = vpack.c.b16 %v177, %v176
      %v185 = vpack.c.b16 %v179, %v178
      %v186 = vpack.c.b16 %v181, %v180
      %v187 = vpack.c.b16 %v182, %v182
      %vm188 = vcmask 130048
      %v190 = vsel %vm188, %v155, 0
      %v193 = vsel %vm188, %v183, 0
      %v196 = vsel %vm188, %v184, 0
      %v199 = vsel %vm188, %v185, 0
      %v202 = vsel %vm188, %v186, 0
      %v205 = vsel %vm188, %v187, 0
      %207 = vmatpush.bf16.xpose.msra.mxu0 0
      %208 = vmatpush.bf16.xpose.msra.mxu0 0
      %209 = vmatpush.bf16.xpose.msra.mxu0 0
      %210 = vmatpush.bf16.xpose.msra.mxu0 %v205
      %211 = vmatpush.bf16.xpose.msra.mxu0 %v202
      %212 = vmatpush.bf16.xpose.msra.mxu0 %v199
      %213 = vmatpush.bf16.xpose.msra.mxu0 %v196
      %214 = vmatpush.bf16.xpose.msra.mxu0 %v193
      %215 = vmatmul.bf16.gmra.mxu0 %v190
      %v216 = vpop.f32.mrf.mxu0
      %v217 = vadd.f32 0.0, %v216
      %v218 = vpop.f32.mrf.mxu0
      %219 = vdwg.mxu0
      %vm220 = vcmask 524288
      %v221 = vsel %vm220, %v217, -inf
      %222 = vmax.xlane.f32.xlu0 %v221
      %v223 = vpop.xlane.xlu0 %222
      %v224 = vsub.f32 %v217, %v223
      %v225 = vmul.f32 %v224, 1.442695
      %v226 = vpow.pop %v225
      %v227 = vsel %vm220, %v226, 0.0
      %228 = vadd.xlane.f32.xlu0 %v227
      %v229 = vpop.xlane.xlu0 %228
      %v230 = vrcp.pop %v229
      %v231 = vmul.f32 %v226, %v230
      %v232 = vpack.c.bf16 %v231, %v231
      %233 = vrot.lane.b32.xlu0 %v183, 64
      %v234 = vpop.permute.xlu0 %233
      %235 = vrot.lane.b32.xlu0 %v184, 64
      %v236 = vpop.permute.xlu0 %235
      %237 = vrot.lane.b32.xlu0 %v185, 64
      %v238 = vpop.permute.xlu0 %237
      %239 = vrot.lane.b32.xlu0 %v186, 64
      %v240 = vpop.permute.xlu0 %239
      %241 = vrot.lane.b32.xlu0 %v187, 64
      %v242 = vpop.permute.xlu0 %241
      %vm247 = vcmask 531456
      %v249 = vsel %vm247, %v232, 0
      %vm251 = vcmask 1040384
      %v252 = vsel 0, 4294967295, 65535
      %v253 = vsel %vm251, %v252, 0
      %v255 = vand.u32 %v242, %v253
      %257 = vmatpush.bf16.msra.mxu0 0
      %258 = vmatpush.bf16.msra.mxu0 0
      %259 = vmatpush.bf16.msra.mxu0 0
      %260 = vmatpush.bf16.msra.mxu0 %v255
      %261 = vmatpush.bf16.msra.mxu0 %v240
      %262 = vmatpush.bf16.msra.mxu0 %v238
      %263 = vmatpush.bf16.msra.mxu0 %v236
      %264 = vmatpush.bf16.msra.mxu0 %v234
      %265 = vmatmul.bf16.gmra.mxu0 %v249
      %v266 = vpop.f32.mrf.mxu0
      %v267 = vadd.f32 0.0, %v266
      %v268 = vpop.f32.mrf.mxu0
      %269 = vdwg.mxu0
      %v270 = vpack.c.bf16 %v267, %v267
      %vm271 = vcmask 122880
      %vm272 = vsmask.f32 256
      %vm273 = vmand %vm271, %vm272
      %v274 = vld [vmem:[%s153] sm:$0x1]
      %v275 = vsel %vm273, %v270, %v274
      %276 = vst [vmem:[%s153] sm:$0x1] %v275
      %277 = vst [vmem:[#allocation1] ss:$9 sm:$0xff] %v155
      %v278 = vld [vmem:[#allocation1] sm:$0xff]
      %280 = vrot.lane.b32.xlu0 %v278, 112
      %v281 = vpop.permute.xlu0 %280
      %282 = vrot.lane.b32.xlu0 %v183, 112
      %v283 = vpop.permute.xlu0 %282
      %284 = vrot.lane.b32.xlu0 %v184, 112
      %v285 = vpop.permute.xlu0 %284
      %286 = vrot.lane.b32.xlu0 %v185, 112
      %v287 = vpop.permute.xlu0 %286
      %288 = vrot.lane.b32.xlu0 %v186, 112
      %v289 = vpop.permute.xlu0 %288
      %290 = vrot.lane.b32.xlu0 %v187, 112
      %v291 = vpop.permute.xlu0 %290
      %v293 = vsel %vm188, %v281, 0
      %v296 = vsel %vm188, %v283, 0
      %v299 = vsel %vm188, %v285, 0
      %v302 = vsel %vm188, %v287, 0
      %v305 = vsel %vm188, %v289, 0
      %v308 = vsel %vm188, %v291, 0
      %310 = vmatpush.bf16.xpose.msra.mxu0 0
      %311 = vmatpush.bf16.xpose.msra.mxu0 0
      %312 = vmatpush.bf16.xpose.msra.mxu0 0
      %313 = vmatpush.bf16.xpose.msra.mxu0 %v308
      %314 = vmatpush.bf16.xpose.msra.mxu0 %v305
      %315 = vmatpush.bf16.xpose.msra.mxu0 %v302
      %316 = vmatpush.bf16.xpose.msra.mxu0 %v299
      %317 = vmatpush.bf16.xpose.msra.mxu0 %v296
      %318 = vmatmul.bf16.gmra.mxu0 %v293
      %v319 = vpop.f32.mrf.mxu0
      %v320 = vadd.f32 0.0, %v319
      %v321 = vpop.f32.mrf.mxu0
      %322 = vdwg.mxu0
      %v323 = vsel %vm220, %v320, -inf
      %324 = vmax.xlane.f32.xlu0 %v323
      %v325 = vpop.xlane.xlu0 %324
      %v326 = vsub.f32 %v320, %v325
      %v327 = vmul.f32 %v326, 1.442695
      %v328 = vpow.pop %v327
      %v329 = vsel %vm220, %v328, 0.0
      %330 = vadd.xlane.f32.xlu0 %v329
      %v331 = vpop.xlane.xlu0 %330
      %v332 = vrcp.pop %v331
      %v333 = vmul.f32 %v328, %v332
      %v334 = vpack.c.bf16 %v333, %v333
      %335 = vrot.lane.b32.xlu0 %v183, 48
      %v336 = vpop.permute.xlu0 %335
      %337 = vrot.lane.b32.xlu0 %v184, 48
      %v338 = vpop.permute.xlu0 %337
      %339 = vrot.lane.b32.xlu0 %v185, 48
      %v340 = vpop.permute.xlu0 %339
      %341 = vrot.lane.b32.xlu0 %v186, 48
      %v342 = vpop.permute.xlu0 %341
      %343 = vrot.lane.b32.xlu0 %v187, 48
      %v344 = vpop.permute.xlu0 %343
      %v350 = vsel %vm247, %v334, 0
      %v353 = vand.u32 %v344, %v253
      %355 = vmatpush.bf16.msra.mxu0 0
      %356 = vmatpush.bf16.msra.mxu0 0
      %357 = vmatpush.bf16.msra.mxu0 0
      %358 = vmatpush.bf16.msra.mxu0 %v353
      %359 = vmatpush.bf16.msra.mxu0 %v342
      %360 = vmatpush.bf16.msra.mxu0 %v340
      %361 = vmatpush.bf16.msra.mxu0 %v338
      %362 = vmatpush.bf16.msra.mxu0 %v336
      %363 = vmatmul.bf16.gmra.mxu0 %v350
      %v364 = vpop.f32.mrf.mxu0
      %v365 = vadd.f32 0.0, %v364
      %v366 = vpop.f32.mrf.mxu0
      %367 = vdwg.mxu0
      %v368 = vpack.c.bf16 %v365, %v365
      %v370 = vrot.slane %v368, 3
      %v373 = vsel %vm251, %v368, %v370
      %375 = vrot.lane.b32.xlu0 %v373, 16
      %v376 = vpop.permute.xlu0 %375
      %vm378 = vcmask 254080
      %vm379 = vmand %vm378, %vm272
      %v380 = vld [vmem:[%s153] sm:$0x1]
      %v381 = vsel %vm379, %v376, %v380
      %382 = vst [vmem:[%s153] sm:$0x1] %v381
      %383 = vst [vmem:[#allocation1] ss:$9 sm:$0xff] %v155
      %v384 = vld [vmem:[#allocation1] sm:$0xff]
      %386 = vrot.lane.b32.xlu0 %v384, 96
      %v387 = vpop.permute.xlu0 %386
      %388 = vrot.lane.b32.xlu0 %v183, 96
      %v389 = vpop.permute.xlu0 %388
      %390 = vrot.lane.b32.xlu0 %v184, 96
      %v391 = vpop.permute.xlu0 %390
      %392 = vrot.lane.b32.xlu0 %v185, 96
      %v393 = vpop.permute.xlu0 %392
      %394 = vrot.lane.b32.xlu0 %v186, 96
      %v395 = vpop.permute.xlu0 %394
      %396 = vrot.lane.b32.xlu0 %v187, 96
      %v397 = vpop.permute.xlu0 %396
      %v399 = vsel %vm188, %v387, 0
      %v402 = vsel %vm188, %v389, 0
      %v405 = vsel %vm188, %v391, 0
      %v408 = vsel %vm188, %v393, 0
      %v411 = vsel %vm188, %v395, 0
      %v414 = vsel %vm188, %v397, 0
      %416 = vmatpush.bf16.xpose.msra.mxu0 0
      %417 = vmatpush.bf16.xpose.msra.mxu0 0
      %418 = vmatpush.bf16.xpose.msra.mxu0 0
      %419 = vmatpush.bf16.xpose.msra.mxu0 %v414
      %420 = vmatpush.bf16.xpose.msra.mxu0 %v411
      %421 = vmatpush.bf16.xpose.msra.mxu0 %v408
      %422 = vmatpush.bf16.xpose.msra.mxu0 %v405
      %423 = vmatpush.bf16.xpose.msra.mxu0 %v402
      %424 = vmatmul.bf16.gmra.mxu0 %v399
      %v425 = vpop.f32.mrf.mxu0
      %v426 = vadd.f32 0.0, %v425
      %v427 = vpop.f32.mrf.mxu0
      %428 = vdwg.mxu0
      %v429 = vsel %vm220, %v426, -inf
      %430 = vmax.xlane.f32.xlu0 %v429
      %v431 = vpop.xlane.xlu0 %430
      %v432 = vsub.f32 %v426, %v431
      %v433 = vmul.f32 %v432, 1.442695
      %v434 = vpow.pop %v433
      %v435 = vsel %vm220, %v434, 0.0
      %436 = vadd.xlane.f32.xlu0 %v435
      %v437 = vpop.xlane.xlu0 %436
      %v438 = vrcp.pop %v437
      %v439 = vmul.f32 %v434, %v438
      %v440 = vpack.c.bf16 %v439, %v439
      %441 = vrot.lane.b32.xlu0 %v183, 32
      %v442 = vpop.permute.xlu0 %441
      %443 = vrot.lane.b32.xlu0 %v184, 32
      %v444 = vpop.permute.xlu0 %443
      %445 = vrot.lane.b32.xlu0 %v185, 32
      %v446 = vpop.permute.xlu0 %445
      %447 = vrot.lane.b32.xlu0 %v186, 32
      %v448 = vpop.permute.xlu0 %447
      %449 = vrot.lane.b32.xlu0 %v187, 32
      %v450 = vpop.permute.xlu0 %449
      %v456 = vsel %vm247, %v440, 0
      %v459 = vand.u32 %v450, %v253
      %461 = vmatpush.bf16.msra.mxu0 0
      %462 = vmatpush.bf16.msra.mxu0 0
      %463 = vmatpush.bf16.msra.mxu0 0
      %464 = vmatpush.bf16.msra.mxu0 %v459
      %465 = vmatpush.bf16.msra.mxu0 %v448
      %466 = vmatpush.bf16.msra.mxu0 %v446
      %467 = vmatpush.bf16.msra.mxu0 %v444
      %468 = vmatpush.bf16.msra.mxu0 %v442
      %469 = vmatmul.bf16.gmra.mxu0 %v456
      %v470 = vpop.f32.mrf.mxu0
      %v471 = vadd.f32 0.0, %v470
      %v472 = vpop.f32.mrf.mxu0
      %473 = vdwg.mxu0
      %v474 = vpack.c.bf16 %v471, %v471
      %v476 = vrot.slane %v474, 3
      %v479 = vsel %vm251, %v474, %v476
      %481 = vrot.lane.b32.xlu0 %v479, 32
      %v482 = vpop.permute.xlu0 %481
      %vm484 = vcmask 385280
      %vm485 = vmand %vm484, %vm272
      %v486 = vld [vmem:[%s153] sm:$0x1]
      %v487 = vsel %vm485, %v482, %v486
      %488 = vst [vmem:[%s153] sm:$0x1] %v487
      %489 = vst [vmem:[#allocation1] ss:$9 sm:$0xff] %v155
      %v490 = vld [vmem:[#allocation1] sm:$0xff]
      %492 = vrot.lane.b32.xlu0 %v490, 80
      %v493 = vpop.permute.xlu0 %492
      %494 = vrot.lane.b32.xlu0 %v183, 80
      %v495 = vpop.permute.xlu0 %494
      %496 = vrot.lane.b32.xlu0 %v184, 80
      %v497 = vpop.permute.xlu0 %496
      %498 = vrot.lane.b32.xlu0 %v185, 80
      %v499 = vpop.permute.xlu0 %498
      %500 = vrot.lane.b32.xlu0 %v186, 80
      %v501 = vpop.permute.xlu0 %500
      %502 = vrot.lane.b32.xlu0 %v187, 80
      %v503 = vpop.permute.xlu0 %502
      %v505 = vsel %vm188, %v493, 0
      %v508 = vsel %vm188, %v495, 0
      %v511 = vsel %vm188, %v497, 0
      %v514 = vsel %vm188, %v499, 0
      %v517 = vsel %vm188, %v501, 0
      %v520 = vsel %vm188, %v503, 0
      %522 = vmatpush.bf16.xpose.msra.mxu0 0
      %523 = vmatpush.bf16.xpose.msra.mxu0 0
      %524 = vmatpush.bf16.xpose.msra.mxu0 0
      %525 = vmatpush.bf16.xpose.msra.mxu0 %v520
      %526 = vmatpush.bf16.xpose.msra.mxu0 %v517
      %527 = vmatpush.bf16.xpose.msra.mxu0 %v514
      %528 = vmatpush.bf16.xpose.msra.mxu0 %v511
      %529 = vmatpush.bf16.xpose.msra.mxu0 %v508
      %530 = vmatmul.bf16.gmra.mxu0 %v505
      %v531 = vpop.f32.mrf.mxu0
      %v532 = vadd.f32 0.0, %v531
      %v533 = vpop.f32.mrf.mxu0
      %534 = vdwg.mxu0
      %v535 = vsel %vm220, %v532, -inf
      %536 = vmax.xlane.f32.xlu0 %v535
      %v537 = vpop.xlane.xlu0 %536
      %v538 = vsub.f32 %v532, %v537
      %v539 = vmul.f32 %v538, 1.442695
      %v540 = vpow.pop %v539
      %v541 = vsel %vm220, %v540, 0.0
      %542 = vadd.xlane.f32.xlu0 %v541
      %v543 = vpop.xlane.xlu0 %542
      %v544 = vrcp.pop %v543
      %v545 = vmul.f32 %v540, %v544
      %v546 = vpack.c.bf16 %v545, %v545
      %547 = vrot.lane.b32.xlu0 %v183, 16
      %v548 = vpop.permute.xlu0 %547
      %549 = vrot.lane.b32.xlu0 %v184, 16
      %v550 = vpop.permute.xlu0 %549
      %551 = vrot.lane.b32.xlu0 %v185, 16
      %v552 = vpop.permute.xlu0 %551
      %553 = vrot.lane.b32.xlu0 %v186, 16
      %v554 = vpop.permute.xlu0 %553
      %555 = vrot.lane.b32.xlu0 %v187, 16
      %v556 = vpop.permute.xlu0 %555
      %v562 = vsel %vm247, %v546, 0
      %v565 = vand.u32 %v556, %v253
      %567 = vmatpush.bf16.msra.mxu0 0
      %568 = vmatpush.bf16.msra.mxu0 0
      %569 = vmatpush.bf16.msra.mxu0 0
      %570 = vmatpush.bf16.msra.mxu0 %v565
      %571 = vmatpush.bf16.msra.mxu0 %v554
      %572 = vmatpush.bf16.msra.mxu0 %v552
      %573 = vmatpush.bf16.msra.mxu0 %v550
      %574 = vmatpush.bf16.msra.mxu0 %v548
      %575 = vmatmul.bf16.gmra.mxu0 %v562
      %v576 = vpop.f32.mrf.mxu0
      %v577 = vadd.f32 0.0, %v576
      %v578 = vpop.f32.mrf.mxu0
      %579 = vdwg.mxu0
      %v580 = vpack.c.bf16 %v577, %v577
      %v582 = vrot.slane %v580, 3
      %v585 = vsel %vm251, %v580, %v582
      %587 = vrot.lane.b32.xlu0 %v585, 48
      %v588 = vpop.permute.xlu0 %587
      %vm590 = vcmask 516480
      %vm591 = vmand %vm590, %vm272
      %v592 = vld [vmem:[%s153] sm:$0x1]
      %v593 = vsel %vm591, %v588, %v592
      %594 = vst [vmem:[%s153] sm:$0x1] %v593
      %p595 = scmp.lt.s32.totalorder %s13, 1
      %s596 = scalar_select %p595, %s13, 1
      %s597 = scalar_lea.vmem %s2, %s596
      // Predicated region
      $region29: #{attention_pool2d_forward.6} parent=27 // pred_check
        %p598 = pneg %p83
      $region30: #{attention_pool2d_forward.6} parent=27 // pred_check_branch
        %600 = sbr.rel (%p598) target = $region32
      $region31: #{attention_pool2d_forward.6} parent=27 // pred_region
        _
      $region32: #{attention_pool2d_forward.6} parent=27 // pred_fallthru
        _
    $region28: #{attention_pool2d_forward.6} parent=5 // pred_fallthru
      _
    %p601 = scmp.le.s32.totalorder 2, %s8
    // Predicated region
    $region33: #{attention_pool2d_forward.6} parent=5 // pred_check
      %p602 = pneg %p601
    $region34: #{attention_pool2d_forward.6} parent=5 // pred_check_branch
      %604 = sbr.rel (%p602) target = $region36
    $region35: #{attention_pool2d_forward.6} parent=5 // pred_region
      %s605 = ssub.s32 %s8, 2
      // Predicated region
      $region37: #{attention_pool2d_forward.6} parent=35 // pred_check
        %p606 = pneg %p89
      $region38: #{attention_pool2d_forward.6} parent=35 // pred_check_branch
        %608 = sbr.rel (%p606) target = $region40
      $region39: #{attention_pool2d_forward.6} parent=35 // pred_region
        %p609 = scmp.lt.s32.totalorder %s14, 1
        %s610 = scalar_select %p609, %s14, 1
        %s611 = scalar_lea.vmem %s2, %s610
      $region40: #{attention_pool2d_forward.6} parent=35 // pred_fallthru
        _
    $region36: #{attention_pool2d_forward.6} parent=5 // pred_fallthru
      _
  $region6: #{attention_pool2d_forward.6} parent=0 // loop_footer
    %s12 = sadd.s32 1, %s8
  $region7: #{attention_pool2d_forward.6} parent=0 // loop_footer_branch
    %7 = sbr.rel target = $region3
  $region8: #{attention_pool2d_forward.6} parent=0 // loop_exit
    _

</llo_original>
